<compile_context>
chip_gen: v7x
topology: tpu7x:2x2x1
jax: 0.10.0
libtpu: 0.0.40
codegen_flags: <defaults>
</compile_context>

<pallas_src>
import functools

import jax
import jax.numpy as jnp
from jax.experimental import pallas as pl
from jax.experimental.pallas import tpu as pltpu


# ---------------------------------------------------------------------------
# Helpers
# ---------------------------------------------------------------------------
def _round_up(a, b):
    return ((a + b - 1) // b) * b


def _fold_bn(gamma, beta, mean, var, eps):
    scale = gamma / jnp.sqrt(var + eps)
    shift = beta - mean * scale
    return scale, shift


# ---------------------------------------------------------------------------
# Stage A: 1x1 expand conv + BN + ReLU   (M-gridded matmul)
# ---------------------------------------------------------------------------
def _expand_kernel(x_ref, w_ref, s_ref, b_ref, o_ref):
    acc = jnp.dot(x_ref[...], w_ref[...], preferred_element_type=jnp.float32)
    o_ref[...] = jnp.maximum(acc * s_ref[...] + b_ref[...], 0.0).astype(o_ref.dtype)


def _pointwise_bn_relu(x_flat, w, scale, shift, *, tm=512):
    M, Cin = x_flat.shape
    Cout = w.shape[1]
    TM = min(tm, _round_up(M, 8))
    Mp = _round_up(M, TM)
    if Mp != M:
        x_flat = jnp.pad(x_flat, ((0, Mp - M), (0, 0)))
    grid = (Mp // TM,)
    out = pl.pallas_call(
        _expand_kernel,
        out_shape=jax.ShapeDtypeStruct((Mp, Cout), x_flat.dtype),
        grid=grid,
        in_specs=[
            pl.BlockSpec((TM, Cin), lambda i: (i, 0)),
            pl.BlockSpec((Cin, Cout), lambda i: (0, 0)),
            pl.BlockSpec((1, Cout), lambda i: (0, 0)),
            pl.BlockSpec((1, Cout), lambda i: (0, 0)),
        ],
        out_specs=pl.BlockSpec((TM, Cout), lambda i: (i, 0)),
        compiler_params=pltpu.CompilerParams(
            dimension_semantics=("parallel",),
            vmem_limit_bytes=48 * 1024 * 1024,
        ),
        cost_estimate=pl.CostEstimate(
            flops=2 * Mp * Cin * Cout,
            transcendentals=0,
            bytes_accessed=4 * (Mp * Cin + Mp * Cout + Cin * Cout + 4 * Cout),
        ),
    )(x_flat, w, scale, shift)
    return out[:M] if Mp != M else out


# ---------------------------------------------------------------------------
# Stage B: depthwise kxk + BN + ReLU + project 1x1 + BN (+ residual), fused
# ---------------------------------------------------------------------------
def _make_dw_project_kernel(k, stride, Ho, Wo, hid, use_shortcut, n_quads):
    def kernel(*refs):
        i = 0
        q_refs = refs[i:i + n_quads]
        i += n_quads
        xres_ref = None
        if use_shortcut:
            xres_ref = refs[i]
            i += 1
        wd_ref, s2_ref, b2_ref, w3t_ref, s3_ref, b3_ref, o_ref = refs[i:i + 7]

        # Depthwise conv: accumulate k*k statically-sliced windows, scaled per channel.
        acc = None
        for dy in range(k):
            for dx in range(k):
                if stride == 1:
                    win = q_refs[0][dy:dy + Ho, dx:dx + Wo, :]
                else:  # stride == 2: taps come from the (row, col)-parity quadrant.
                    q = q_refs[(dy % 2) * 2 + (dx % 2)]
                    r0, c0 = dy // 2, dx // 2
                    win = q[r0:r0 + Ho, c0:c0 + Wo, :]
                tap = wd_ref[dy * k + dx:dy * k + dx + 1, :]        # (1, hid)
                term = win * tap                                    # (Ho, Wo, hid)
                acc = term if acc is None else acc + term

        # BN2 + ReLU.
        y2 = jnp.maximum(acc * s2_ref[...] + b2_ref[...], 0.0)      # (Ho, Wo, hid)
        y2f = y2.reshape(Ho * Wo, hid)

        # Project 1x1 conv as (oup, hid) x (M, hid)^T -> (oup, M): lane-dense output.
        out = jax.lax.dot_general(
            w3t_ref[...], y2f, (((1,), (1,)), ((), ())),
            preferred_element_type=jnp.float32)                     # (oup, Ho*Wo)
        out = out * s3_ref[...] + b3_ref[...]                       # BN3
        if use_shortcut:
            out = out + xres_ref[...]                               # residual add
        o_ref[...] = out.astype(o_ref.dtype)

    return kernel


def _dw_project_call(quads, x_res, wd, s2, b2, w3t, s3, b3, *,
                     k, stride, Ho, Wo, out_dtype):
    N = quads[0].shape[0]
    hid = wd.shape[1]
    oup = w3t.shape[0]
    use_shortcut = x_res is not None
    kernel = _make_dw_project_kernel(k, stride, Ho, Wo, hid, use_shortcut, len(quads))

    inputs, in_specs = [], []
    for q in quads:
        _, Hq, Wq, _ = q.shape
        in_specs.append(pl.BlockSpec((None, Hq, Wq, hid), lambda n: (n, 0, 0, 0)))
        inputs.append(q)
    if use_shortcut:
        in_specs.append(pl.BlockSpec((None, oup, Ho * Wo), lambda n: (n, 0, 0)))
        inputs.append(x_res)
    for arr in (wd, s2, b2, w3t, s3, b3):
        in_specs.append(pl.BlockSpec(arr.shape, lambda n: (0, 0)))
        inputs.append(arr)

    bytes_accessed = sum(int(a.size) * 4 for a in inputs) + N * Ho * Wo * oup * 4
    flops = N * Ho * Wo * hid * (2 * k * k + 2 * oup)
    return pl.pallas_call(
        kernel,
        out_shape=jax.ShapeDtypeStruct((N, oup, Ho * Wo), out_dtype),
        grid=(N,),
        in_specs=in_specs,
        out_specs=pl.BlockSpec((None, oup, Ho * Wo), lambda n: (n, 0, 0)),
        compiler_params=pltpu.CompilerParams(
            dimension_semantics=("parallel",),
            vmem_limit_bytes=48 * 1024 * 1024,
        ),
        cost_estimate=pl.CostEstimate(
            flops=flops, transcendentals=0, bytes_accessed=bytes_accessed),
    )(*inputs)


# ---------------------------------------------------------------------------
# Module wrapper
# ---------------------------------------------------------------------------
class InvertedResidualPallas:
    """Pallas/TPU forward pass of nbmacro.InvertedResidual (inference-mode BN)."""

    def __init__(self, inp, oup, stride, t, k=3, use_se=False, *, key=None, eps=1e-5):
        assert stride in (1, 2)
        self.inp, self.oup, self.stride, self.t, self.k = inp, oup, stride, t, k
        self.eps = float(eps)
        self.use_se = use_se  # not used in the reference forward
        self.use_shortcut = (inp == oup and stride == 1)
        hid = int(round(inp * t))
        self.hidden = hid

        if key is None:
            key = jax.random.PRNGKey(0)
        keys = iter(jax.random.split(key, 16))

        def bn_params(c):
            g = 1.0 + 0.1 * jax.random.normal(next(keys), (c,), jnp.float32)
            b = 0.1 * jax.random.normal(next(keys), (c,), jnp.float32)
            m = 0.05 * jax.random.normal(next(keys), (c,), jnp.float32)
            v = jnp.abs(1.0 + 0.1 * jax.random.normal(next(keys), (c,), jnp.float32))
            return g, b, m, v

        # --- expand 1x1 (only when t != 1) ------------------------------------
        if t != 1:
            self.w1_raw = 0.1 * jax.random.normal(next(keys), (hid, inp, 1, 1), jnp.float32)
            self.bn1_raw = bn_params(hid)
            s1, b1 = _fold_bn(*self.bn1_raw, self.eps)
            self.w1 = self.w1_raw.reshape(hid, inp).T            # (inp, hid)
            self.s1, self.b1 = s1.reshape(1, hid), b1.reshape(1, hid)
        else:
            self.w1_raw = None

        # --- depthwise kxk -----------------------------------------------------
        self.wd_raw = 0.1 * jax.random.normal(next(keys), (hid, 1, k, k), jnp.float32)
        self.bn2_raw = bn_params(hid)
        s2, b2 = _fold_bn(*self.bn2_raw, self.eps)
        self.wd = jnp.transpose(self.wd_raw.reshape(hid, k, k), (1, 2, 0)).reshape(k * k, hid)
        self.s2, self.b2 = s2.reshape(1, hid), b2.reshape(1, hid)

        # --- project 1x1 ---------------------------------------------------------
        self.w3_raw = 0.1 * jax.random.normal(next(keys), (oup, hid, 1, 1), jnp.float32)
        self.bn3_raw = bn_params(oup)
        s3, b3 = _fold_bn(*self.bn3_raw, self.eps)
        self.w3t = self.w3_raw.reshape(oup, hid)                 # (oup, hid)
        self.s3, self.b3 = s3.reshape(oup, 1), b3.reshape(oup, 1)

    @functools.partial(jax.jit, static_argnums=0)
    def __call__(self, x):
        # x: NCHW float32
        N, Cin, H, W = x.shape
        assert Cin == self.inp
        s, k, hid, oup = self.stride, self.k, self.hidden, self.oup
        p = k // 2
        Ho = (H + 2 * p - k) // s + 1
        Wo = (W + 2 * p - k) // s + 1

        x_nhwc = jnp.transpose(x, (0, 2, 3, 1))                  # (N, H, W, Cin)

        # Stage A: expand pointwise + BN + ReLU (skipped when t == 1).
        if self.t != 1:
            y1_flat = _pointwise_bn_relu(x_nhwc.reshape(N * H * W, Cin),
                                         self.w1, self.s1, self.b1)
            y1 = y1_flat.reshape(N, H, W, hid)
        else:
            y1 = x_nhwc                                          # hid == inp

        # Spatial zero padding for the depthwise conv.
        y1p = jnp.pad(y1, ((0, 0), (p, p), (p, p), (0, 0)))
        if s == 1:
            quads = (y1p,)
        else:
            # Row/column parity split so every stride-2 tap is a contiguous slice.
            quads = tuple(y1p[:, r::2, c::2, :] for r in (0, 1) for c in (0, 1))

        x_res = x.reshape(N, Cin, H * W) if self.use_shortcut else None

        # Stage B: fused depthwise + BN + ReLU + project + BN (+ residual).
        out_flat = _dw_project_call(quads, x_res, self.wd, self.s2, self.b2,
                                    self.w3t, self.s3, self.b3,
                                    k=k, stride=s, Ho=Ho, Wo=Wo, out_dtype=x.dtype)
        return out_flat.reshape(N, oup, Ho, Wo)                  # already NCHW


# ---------------------------------------------------------------------------
# Plain-JAX reference for correctness checking
# ---------------------------------------------------------------------------
def _reference(mod: InvertedResidualPallas, x):
    P = jax.lax.Precision.HIGHEST
    dn = ("NCHW", "OIHW", "NCHW")
    eps = mod.eps

    def bn(y, params):
        g, b, m, v = params
        inv = g / jnp.sqrt(v + eps)
        return y * inv[None, :, None, None] + (b - m * inv)[None, :, None, None]

    h = x
    if mod.t != 1:
        h = jax.lax.conv_general_dilated(h, mod.w1_raw, (1, 1), "VALID",
                                         dimension_numbers=dn, precision=P)
        h = jax.nn.relu(bn(h, mod.bn1_raw))
    p = mod.k // 2
    h = jax.lax.conv_general_dilated(h, mod.wd_raw, (mod.stride, mod.stride),
                                     [(p, p), (p, p)], dimension_numbers=dn,
                                     feature_group_count=mod.hidden, precision=P)
    h = jax.nn.relu(bn(h, mod.bn2_raw))
    h = jax.lax.conv_general_dilated(h, mod.w3_raw, (1, 1), "VALID",
                                     dimension_numbers=dn, precision=P)
    h = bn(h, mod.bn3_raw)
    if mod.use_shortcut:
        h = h + x
    return h


if __name__ == "__main__":
    key = jax.random.PRNGKey(0)
    kx, k1, k2, k3 = jax.random.split(key, 4)
    x = jax.random.normal(kx, (2, 4, 16, 16), jnp.float32)

    # Case 1: expand (t=6), stride=1, inp == oup -> residual shortcut.
    m1 = InvertedResidualPallas(inp=4, oup=4, stride=1, t=6, k=3, key=k1)
    y1 = jax.block_until_ready(m1(x))
    r1 = _reference(m1, x)
    assert y1.shape == (2, 4, 16, 16), y1.shape
    assert jnp.allclose(y1, r1, atol=1e-4, rtol=1e-4), float(jnp.max(jnp.abs(y1 - r1)))

    # Case 2: expand (t=6), stride=2 downsample with channel change.
    m2 = InvertedResidualPallas(inp=4, oup=8, stride=2, t=6, k=3, key=k2)
    y2 = jax.block_until_ready(m2(x))
    r2 = _reference(m2, x)
    assert y2.shape == (2, 8, 8, 8), y2.shape
    assert jnp.allclose(y2, r2, atol=1e-4, rtol=1e-4), float(jnp.max(jnp.abs(y2 - r2)))

    # Case 3: t=1 (no expand), stride=1, shortcut.
    m3 = InvertedResidualPallas(inp=4, oup=4, stride=1, t=1, k=3, key=k3)
    y3 = jax.block_until_ready(m3(x))
    r3 = _reference(m3, x)
    assert y3.shape == (2, 4, 16, 16), y3.shape
    assert jnp.allclose(y3, r3, atol=1e-4, rtol=1e-4), float(jnp.max(jnp.abs(y3 - r3)))

    print("KERNEL_OK")
</pallas_src>

<mosaic_0001>
module attributes {stable_mosaic.version = 11 : i64} {
  func.func @_expand_kernel(%arg0: i32, %arg1: memref<512x4xf32, #tpu.memory_space<vmem>>, %arg2: memref<4x24xf32, #tpu.memory_space<vmem>>, %arg3: memref<1x24xf32, #tpu.memory_space<vmem>>, %arg4: memref<1x24xf32, #tpu.memory_space<vmem>>, %arg5: memref<512x24xf32, #tpu.memory_space<vmem>>) attributes {dimension_semantics = [#tpu.dimension_semantics<parallel>], iteration_bounds = array<i64: 1>, scalar_prefetch = 0 : i64, scratch_operands = 0 : i64, tpu.core_type = #tpu.core_type<tc>, window_params = [{transform_indices = @transform_0, window_bounds = array<i64: 512, 4>}, {pipeline_mode = #tpu.pipeline_mode<synchronous>, transform_indices = @transform_1, window_bounds = array<i64: 4, 24>}, {pipeline_mode = #tpu.pipeline_mode<synchronous>, transform_indices = @transform_2, window_bounds = array<i64: 1, 24>}, {pipeline_mode = #tpu.pipeline_mode<synchronous>, transform_indices = @transform_3, window_bounds = array<i64: 1, 24>}, {transform_indices = @transform_4, window_bounds = array<i64: 512, 24>}]} {
    %c0 = arith.constant 0 : index
    %c0_0 = arith.constant 0 : index
    %0 = vector.load %arg1[%c0, %c0_0] : memref<512x4xf32, #tpu.memory_space<vmem>>, vector<512x4xf32>
    %c0_1 = arith.constant 0 : index
    %c0_2 = arith.constant 0 : index
    %1 = vector.load %arg2[%c0_1, %c0_2] : memref<4x24xf32, #tpu.memory_space<vmem>>, vector<4x24xf32>
    %cst = arith.constant dense<0.000000e+00> : vector<512x24xf32>
    %2 = tpu.matmul %0, %1, %cst {dimension_numbers = #tpu.dot_dimension_numbers<[1], [0], [0], [1], [0, 0, 1, 1], [], []>} : vector<512x4xf32>, vector<4x24xf32>, vector<512x24xf32> -> vector<512x24xf32>
    %c0_3 = arith.constant 0 : index
    %c0_4 = arith.constant 0 : index
    %3 = vector.load %arg3[%c0_3, %c0_4] : memref<1x24xf32, #tpu.memory_space<vmem>>, vector<1x24xf32>
    %4 = vector.broadcast %3 : vector<1x24xf32> to vector<512x24xf32>
    %5 = arith.mulf %2, %4 : vector<512x24xf32>
    %c0_5 = arith.constant 0 : index
    %c0_6 = arith.constant 0 : index
    %6 = vector.load %arg4[%c0_5, %c0_6] : memref<1x24xf32, #tpu.memory_space<vmem>>, vector<1x24xf32>
    %7 = vector.broadcast %6 : vector<1x24xf32> to vector<512x24xf32>
    %8 = arith.addf %5, %7 : vector<512x24xf32>
    %cst_7 = arith.constant 0.000000e+00 : f32
    %9 = vector.broadcast %cst_7 : f32 to vector<512x24xf32>
    %10 = arith.maximumf %8, %9 : vector<512x24xf32>
    %c0_8 = arith.constant 0 : index
    %c0_9 = arith.constant 0 : index
    %11 = vector.load %arg5[%c0_8, %c0_9] : memref<512x24xf32, #tpu.memory_space<vmem>>, vector<512x24xf32>
    tpu.vector_store %arg5[%c0_8, %c0_9], %10 {strides = array<i32>} : memref<512x24xf32, #tpu.memory_space<vmem>>, vector<512x24xf32>,
    return
  }
  func.func @transform_0(%arg0: i32) -> (i32, i32) {
    %c0_i32 = arith.constant 0 : i32
    %c0_i32_0 = arith.constant 0 : i32
    return %arg0, %c0_i32 : i32, i32
  }
  func.func @transform_1(%arg0: i32) -> (i32, i32) {
    %c0_i32 = arith.constant 0 : i32
    %c0_i32_0 = arith.constant 0 : i32
    %c0_i32_1 = arith.constant 0 : i32
    return %c0_i32, %c0_i32_0 : i32, i32
  }
  func.func @transform_2(%arg0: i32) -> (i32, i32) {
    %c0_i32 = arith.constant 0 : i32
    %c0_i32_0 = arith.constant 0 : i32
    %c0_i32_1 = arith.constant 0 : i32
    return %c0_i32, %c0_i32_0 : i32, i32
  }
  func.func @transform_3(%arg0: i32) -> (i32, i32) {
    %c0_i32 = arith.constant 0 : i32
    %c0_i32_0 = arith.constant 0 : i32
    %c0_i32_1 = arith.constant 0 : i32
    return %c0_i32, %c0_i32_0 : i32, i32
  }
  func.func @transform_4(%arg0: i32) -> (i32, i32) {
    %c0_i32 = arith.constant 0 : i32
    %c0_i32_0 = arith.constant 0 : i32
    return %arg0, %c0_i32 : i32, i32
  }
}

module attributes {stable_mosaic.version = 11 : i64} {
  func.func @kernel(%arg0: i32, %arg1: memref<1x18x18x24xf32, #tpu.memory_space<vmem>>, %arg2: memref<1x4x256xf32, #tpu.memory_space<vmem>>, %arg3: memref<9x24xf32, #tpu.memory_space<vmem>>, %arg4: memref<1x24xf32, #tpu.memory_space<vmem>>, %arg5: memref<1x24xf32, #tpu.memory_space<vmem>>, %arg6: memref<4x24xf32, #tpu.memory_space<vmem>>, %arg7: memref<4x1xf32, #tpu.memory_space<vmem>>, %arg8: memref<4x1xf32, #tpu.memory_space<vmem>>, %arg9: memref<1x4x256xf32, #tpu.memory_space<vmem>>) attributes {dimension_semantics = [#tpu.dimension_semantics<parallel>], iteration_bounds = array<i64: 2>, scalar_prefetch = 0 : i64, scratch_operands = 0 : i64, tpu.core_type = #tpu.core_type<tc>, window_params = [{transform_indices = @transform_0, window_bounds = array<i64: 1, 18, 18, 24>}, {transform_indices = @transform_1, window_bounds = array<i64: 1, 4, 256>}, {pipeline_mode = #tpu.pipeline_mode<synchronous>, transform_indices = @transform_2, window_bounds = array<i64: 9, 24>}, {pipeline_mode = #tpu.pipeline_mode<synchronous>, transform_indices = @transform_3, window_bounds = array<i64: 1, 24>}, {pipeline_mode = #tpu.pipeline_mode<synchronous>, transform_indices = @transform_4, window_bounds = array<i64: 1, 24>}, {pipeline_mode = #tpu.pipeline_mode<synchronous>, transform_indices = @transform_5, window_bounds = array<i64: 4, 24>}, {pipeline_mode = #tpu.pipeline_mode<synchronous>, transform_indices = @transform_6, window_bounds = array<i64: 4, 1>}, {pipeline_mode = #tpu.pipeline_mode<synchronous>, transform_indices = @transform_7, window_bounds = array<i64: 4, 1>}, {transform_indices = @transform_8, window_bounds = array<i64: 1, 4, 256>}]} {
    %c0 = arith.constant 0 : index
    %c0_0 = arith.constant 0 : index
    %c0_1 = arith.constant 0 : index
    %c0_2 = arith.constant 0 : index
    %0 = vector.load %arg1[%c0, %c0_0, %c0_1, %c0_2] : memref<1x18x18x24xf32, #tpu.memory_space<vmem>>, vector<1x16x16x24xf32>
    %1 = vector.shape_cast %0 : vector<1x16x16x24xf32> to vector<16x16x24xf32>
    %c0_3 = arith.constant 0 : index
    %c0_4 = arith.constant 0 : index
    %2 = vector.load %arg3[%c0_3, %c0_4] : memref<9x24xf32, #tpu.memory_space<vmem>>, vector<1x24xf32>
    %3 = vector.shape_cast %2 : vector<1x24xf32> to vector<1x1x24xf32>
    %4 = vector.broadcast %3 : vector<1x1x24xf32> to vector<16x16x24xf32>
    %5 = arith.mulf %1, %4 : vector<16x16x24xf32>
    %c0_5 = arith.constant 0 : index
    %c0_6 = arith.constant 0 : index
    %c1 = arith.constant 1 : index
    %c0_7 = arith.constant 0 : index
    %6 = vector.load %arg1[%c0_5, %c0_6, %c1, %c0_7] : memref<1x18x18x24xf32, #tpu.memory_space<vmem>>, vector<1x16x16x24xf32>
    %7 = vector.shape_cast %6 : vector<1x16x16x24xf32> to vector<16x16x24xf32>
    %c1_8 = arith.constant 1 : index
    %c0_9 = arith.constant 0 : index
    %8 = vector.load %arg3[%c1_8, %c0_9] : memref<9x24xf32, #tpu.memory_space<vmem>>, vector<1x24xf32>
    %9 = vector.shape_cast %8 : vector<1x24xf32> to vector<1x1x24xf32>
    %10 = vector.broadcast %9 : vector<1x1x24xf32> to vector<16x16x24xf32>
    %11 = arith.mulf %7, %10 : vector<16x16x24xf32>
    %12 = arith.addf %5, %11 : vector<16x16x24xf32>
    %c0_10 = arith.constant 0 : index
    %c0_11 = arith.constant 0 : index
    %c2 = arith.constant 2 : index
    %c0_12 = arith.constant 0 : index
    %13 = vector.load %arg1[%c0_10, %c0_11, %c2, %c0_12] : memref<1x18x18x24xf32, #tpu.memory_space<vmem>>, vector<1x16x16x24xf32>
    %14 = vector.shape_cast %13 : vector<1x16x16x24xf32> to vector<16x16x24xf32>
    %c2_13 = arith.constant 2 : index
    %c0_14 = arith.constant 0 : index
    %15 = vector.load %arg3[%c2_13, %c0_14] : memref<9x24xf32, #tpu.memory_space<vmem>>, vector<1x24xf32>
    %16 = vector.shape_cast %15 : vector<1x24xf32> to vector<1x1x24xf32>
    %17 = vector.broadcast %16 : vector<1x1x24xf32> to vector<16x16x24xf32>
    %18 = arith.mulf %14, %17 : vector<16x16x24xf32>
    %19 = arith.addf %12, %18 : vector<16x16x24xf32>
    %c0_15 = arith.constant 0 : index
    %c1_16 = arith.constant 1 : index
    %c0_17 = arith.constant 0 : index
    %c0_18 = arith.constant 0 : index
    %20 = vector.load %arg1[%c0_15, %c1_16, %c0_17, %c0_18] : memref<1x18x18x24xf32, #tpu.memory_space<vmem>>, vector<1x16x16x24xf32>
    %21 = vector.shape_cast %20 : vector<1x16x16x24xf32> to vector<16x16x24xf32>
    %c3 = arith.constant 3 : index
    %c0_19 = arith.constant 0 : index
    %22 = vector.load %arg3[%c3, %c0_19] : memref<9x24xf32, #tpu.memory_space<vmem>>, vector<1x24xf32>
    %23 = vector.shape_cast %22 : vector<1x24xf32> to vector<1x1x24xf32>
    %24 = vector.broadcast %23 : vector<1x1x24xf32> to vector<16x16x24xf32>
    %25 = arith.mulf %21, %24 : vector<16x16x24xf32>
    %26 = arith.addf %19, %25 : vector<16x16x24xf32>
    %c0_20 = arith.constant 0 : index
    %c1_21 = arith.constant 1 : index
    %c1_22 = arith.constant 1 : index
    %c0_23 = arith.constant 0 : index
    %27 = vector.load %arg1[%c0_20, %c1_21, %c1_22, %c0_23] : memref<1x18x18x24xf32, #tpu.memory_space<vmem>>, vector<1x16x16x24xf32>
    %28 = vector.shape_cast %27 : vector<1x16x16x24xf32> to vector<16x16x24xf32>
    %c4 = arith.constant 4 : index
    %c0_24 = arith.constant 0 : index
    %29 = vector.load %arg3[%c4, %c0_24] : memref<9x24xf32, #tpu.memory_space<vmem>>, vector<1x24xf32>
    %30 = vector.shape_cast %29 : vector<1x24xf32> to vector<1x1x24xf32>
    %31 = vector.broadcast %30 : vector<1x1x24xf32> to vector<16x16x24xf32>
    %32 = arith.mulf %28, %31 : vector<16x16x24xf32>
    %33 = arith.addf %26, %32 : vector<16x16x24xf32>
    %c0_25 = arith.constant 0 : index
    %c1_26 = arith.constant 1 : index
    %c2_27 = arith.constant 2 : index
    %c0_28 = arith.constant 0 : index
    %34 = vector.load %arg1[%c0_25, %c1_26, %c2_27, %c0_28] : memref<1x18x18x24xf32, #tpu.memory_space<vmem>>, vector<1x16x16x24xf32>
    %35 = vector.shape_cast %34 : vector<1x16x16x24xf32> to vector<16x16x24xf32>
    %c5 = arith.constant 5 : index
    %c0_29 = arith.constant 0 : index
    %36 = vector.load %arg3[%c5, %c0_29] : memref<9x24xf32, #tpu.memory_space<vmem>>, vector<1x24xf32>
    %37 = vector.shape_cast %36 : vector<1x24xf32> to vector<1x1x24xf32>
    %38 = vector.broadcast %37 : vector<1x1x24xf32> to vector<16x16x24xf32>
    %39 = arith.mulf %35, %38 : vector<16x16x24xf32>
    %40 = arith.addf %33, %39 : vector<16x16x24xf32>
    %c0_30 = arith.constant 0 : index
    %c2_31 = arith.constant 2 : index
    %c0_32 = arith.constant 0 : index
    %c0_33 = arith.constant 0 : index
    %41 = vector.load %arg1[%c0_30, %c2_31, %c0_32, %c0_33] : memref<1x18x18x24xf32, #tpu.memory_space<vmem>>, vector<1x16x16x24xf32>
    %42 = vector.shape_cast %41 : vector<1x16x16x24xf32> to vector<16x16x24xf32>
    %c6 = arith.constant 6 : index
    %c0_34 = arith.constant 0 : index
    %43 = vector.load %arg3[%c6, %c0_34] : memref<9x24xf32, #tpu.memory_space<vmem>>, vector<1x24xf32>
    %44 = vector.shape_cast %43 : vector<1x24xf32> to vector<1x1x24xf32>
    %45 = vector.broadcast %44 : vector<1x1x24xf32> to vector<16x16x24xf32>
    %46 = arith.mulf %42, %45 : vector<16x16x24xf32>
    %47 = arith.addf %40, %46 : vector<16x16x24xf32>
    %c0_35 = arith.constant 0 : index
    %c2_36 = arith.constant 2 : index
    %c1_37 = arith.constant 1 : index
    %c0_38 = arith.constant 0 : index
    %48 = vector.load %arg1[%c0_35, %c2_36, %c1_37, %c0_38] : memref<1x18x18x24xf32, #tpu.memory_space<vmem>>, vector<1x16x16x24xf32>
    %49 = vector.shape_cast %48 : vector<1x16x16x24xf32> to vector<16x16x24xf32>
    %c7 = arith.constant 7 : index
    %c0_39 = arith.constant 0 : index
    %50 = vector.load %arg3[%c7, %c0_39] : memref<9x24xf32, #tpu.memory_space<vmem>>, vector<1x24xf32>
    %51 = vector.shape_cast %50 : vector<1x24xf32> to vector<1x1x24xf32>
    %52 = vector.broadcast %51 : vector<1x1x24xf32> to vector<16x16x24xf32>
    %53 = arith.mulf %49, %52 : vector<16x16x24xf32>
    %54 = arith.addf %47, %53 : vector<16x16x24xf32>
    %c0_40 = arith.constant 0 : index
    %c2_41 = arith.constant 2 : index
    %c2_42 = arith.constant 2 : index
    %c0_43 = arith.constant 0 : index
    %55 = vector.load %arg1[%c0_40, %c2_41, %c2_42, %c0_43] : memref<1x18x18x24xf32, #tpu.memory_space<vmem>>, vector<1x16x16x24xf32>
    %56 = vector.shape_cast %55 : vector<1x16x16x24xf32> to vector<16x16x24xf32>
    %c8 = arith.constant 8 : index
    %c0_44 = arith.constant 0 : index
    %57 = vector.load %arg3[%c8, %c0_44] : memref<9x24xf32, #tpu.memory_space<vmem>>, vector<1x24xf32>
    %58 = vector.shape_cast %57 : vector<1x24xf32> to vector<1x1x24xf32>
    %59 = vector.broadcast %58 : vector<1x1x24xf32> to vector<16x16x24xf32>
    %60 = arith.mulf %56, %59 : vector<16x16x24xf32>
    %61 = arith.addf %54, %60 : vector<16x16x24xf32>
    %c0_45 = arith.constant 0 : index
    %c0_46 = arith.constant 0 : index
    %62 = vector.load %arg4[%c0_45, %c0_46] : memref<1x24xf32, #tpu.memory_space<vmem>>, vector<1x24xf32>
    %63 = vector.shape_cast %62 : vector<1x24xf32> to vector<1x1x24xf32>
    %64 = vector.broadcast %63 : vector<1x1x24xf32> to vector<16x16x24xf32>
    %65 = arith.mulf %61, %64 : vector<16x16x24xf32>
    %c0_47 = arith.constant 0 : index
    %c0_48 = arith.constant 0 : index
    %66 = vector.load %arg5[%c0_47, %c0_48] : memref<1x24xf32, #tpu.memory_space<vmem>>, vector<1x24xf32>
    %67 = vector.shape_cast %66 : vector<1x24xf32> to vector<1x1x24xf32>
    %68 = vector.broadcast %67 : vector<1x1x24xf32> to vector<16x16x24xf32>
    %69 = arith.addf %65, %68 : vector<16x16x24xf32>
    %cst = arith.constant 0.000000e+00 : f32
    %70 = vector.broadcast %cst : f32 to vector<16x16x24xf32>
    %71 = arith.maximumf %69, %70 : vector<16x16x24xf32>
    %72 = vector.shape_cast %71 : vector<16x16x24xf32> to vector<256x24xf32>
    %c0_49 = arith.constant 0 : index
    %c0_50 = arith.constant 0 : index
    %73 = vector.load %arg6[%c0_49, %c0_50] : memref<4x24xf32, #tpu.memory_space<vmem>>, vector<4x24xf32>
    %cst_51 = arith.constant dense<0.000000e+00> : vector<4x256xf32>
    %74 = tpu.matmul %73, %72, %cst_51 {dimension_numbers = #tpu.dot_dimension_numbers<[1], [1], [0], [0], [0, 0, 1, 0], [], []>} : vector<4x24xf32>, vector<256x24xf32>, vector<4x256xf32> -> vector<4x256xf32>
    %c0_52 = arith.constant 0 : index
    %c0_53 = arith.constant 0 : index
    %75 = vector.load %arg7[%c0_52, %c0_53] : memref<4x1xf32, #tpu.memory_space<vmem>>, vector<4x1xf32>
    %76 = vector.broadcast %75 : vector<4x1xf32> to vector<4x256xf32>
    %77 = arith.mulf %74, %76 : vector<4x256xf32>
    %c0_54 = arith.constant 0 : index
    %c0_55 = arith.constant 0 : index
    %78 = vector.load %arg8[%c0_54, %c0_55] : memref<4x1xf32, #tpu.memory_space<vmem>>, vector<4x1xf32>
    %79 = vector.broadcast %78 : vector<4x1xf32> to vector<4x256xf32>
    %80 = arith.addf %77, %79 : vector<4x256xf32>
    %c0_56 = arith.constant 0 : index
    %c0_57 = arith.constant 0 : index
    %c0_58 = arith.constant 0 : index
    %81 = vector.load %arg2[%c0_56, %c0_57, %c0_58] : memref<1x4x256xf32, #tpu.memory_space<vmem>>, vector<1x4x256xf32>
    %82 = vector.shape_cast %81 : vector<1x4x256xf32> to vector<4x256xf32>
    %83 = arith.addf %80, %82 : vector<4x256xf32>
    %c0_59 = arith.constant 0 : index
    %c0_60 = arith.constant 0 : index
    %c0_61 = arith.constant 0 : index
    %84 = vector.load %arg9[%c0_59, %c0_60, %c0_61] : memref<1x4x256xf32, #tpu.memory_space<vmem>>, vector<1x4x256xf32>
    %85 = vector.shape_cast %84 : vector<1x4x256xf32> to vector<4x256xf32>
    %86 = vector.shape_cast %83 : vector<4x256xf32> to vector<1x4x256xf32>
    tpu.vector_store %arg9[%c0_59, %c0_60, %c0_61], %86 {strides = array<i32>} : memref<1x4x256xf32, #tpu.memory_space<vmem>>, vector<1x4x256xf32>,
    return
  }
  func.func @transform_0(%arg0: i32) -> (i32, i32, i32, i32) {
    %c0_i32 = arith.constant 0 : i32
    %c0_i32_0 = arith.constant 0 : i32
    %c0_i32_1 = arith.constant 0 : i32
    %c0_i32_2 = arith.constant 0 : i32
    return %arg0, %c0_i32, %c0_i32_0, %c0_i32_1 : i32, i32, i32, i32
  }
  func.func @transform_1(%arg0: i32) -> (i32, i32, i32) {
    %c0_i32 = arith.constant 0 : i32
    %c0_i32_0 = arith.constant 0 : i32
    %c0_i32_1 = arith.constant 0 : i32
    return %arg0, %c0_i32, %c0_i32_0 : i32, i32, i32
  }
  func.func @transform_2(%arg0: i32) -> (i32, i32) {
    %c0_i32 = arith.constant 0 : i32
    %c0_i32_0 = arith.constant 0 : i32
    %c0_i32_1 = arith.constant 0 : i32
    return %c0_i32, %c0_i32_0 : i32, i32
  }
  func.func @transform_3(%arg0: i32) -> (i32, i32) {
    %c0_i32 = arith.constant 0 : i32
    %c0_i32_0 = arith.constant 0 : i32
    %c0_i32_1 = arith.constant 0 : i32
    return %c0_i32, %c0_i32_0 : i32, i32
  }
  func.func @transform_4(%arg0: i32) -> (i32, i32) {
    %c0_i32 = arith.constant 0 : i32
    %c0_i32_0 = arith.constant 0 : i32
    %c0_i32_1 = arith.constant 0 : i32
    return %c0_i32, %c0_i32_0 : i32, i32
  }
  func.func @transform_5(%arg0: i32) -> (i32, i32) {
    %c0_i32 = arith.constant 0 : i32
    %c0_i32_0 = arith.constant 0 : i32
    %c0_i32_1 = arith.constant 0 : i32
    return %c0_i32, %c0_i32_0 : i32, i32
  }
  func.func @transform_6(%arg0: i32) -> (i32, i32) {
    %c0_i32 = arith.constant 0 : i32
    %c0_i32_0 = arith.constant 0 : i32
    %c0_i32_1 = arith.constant 0 : i32
    return %c0_i32, %c0_i32_0 : i32, i32
  }
  func.func @transform_7(%arg0: i32) -> (i32, i32) {
    %c0_i32 = arith.constant 0 : i32
    %c0_i32_0 = arith.constant 0 : i32
    %c0_i32_1 = arith.constant 0 : i32
    return %c0_i32, %c0_i32_0 : i32, i32
  }
  func.func @transform_8(%arg0: i32) -> (i32, i32, i32) {
    %c0_i32 = arith.constant 0 : i32
    %c0_i32_0 = arith.constant 0 : i32
    %c0_i32_1 = arith.constant 0 : i32
    return %arg0, %c0_i32, %c0_i32_0 : i32, i32, i32
  }
}

</mosaic_0001>

<llo_original>
// kernel: a_call__.2
$region0: #{a_call__.2}
  #allocation0 [shape = 'u32[]', space=smem, size = 0x4, offset = 0x4, fixed_abs, tag = 'smem constant byte address 0x4 - core index']
  #allocation1 [shape = 'u32[144,128]{1,0:T(1,128)}', space=vmem, size = 0x12000, scoped, tag = 'internal scratch']
  %s0 = inlined_call_operand.vmem [shape: f32[512,4], index: 0, kind: input, shape index: {}]
  %s1 = inlined_call_operand.vmem [shape: f32[4,24], index: 1, kind: input, shape index: {}]
  %s2 = inlined_call_operand.vmem [shape: f32[1,24], index: 2, kind: input, shape index: {}]
  %s3 = inlined_call_operand.vmem [shape: f32[1,24], index: 3, kind: input, shape index: {}]
  %s4 = inlined_call_operand.vmem [shape: f32[512,24], index: 4, kind: output, shape index: {}]
  %s5 = sld [smem:[#allocation0]]
  $region26: #{a_call__.2} parent=0
    _
  %s7 = ssub.s32 1, %s5
  %s8 = scalar_select 0, %s7, %s5
  // Predicated region
  $region2: #{a_call__.2} parent=0 // pred_check
    _
  $region3: #{a_call__.2} parent=0 // pred_check_branch
    %10 = sbr.rel (0) target = $region5
  $region4: #{a_call__.2} parent=0 // pred_region
    _
  $region5: #{a_call__.2} parent=0 // pred_fallthru
    _
  // Predicated region
  $region6: #{a_call__.2} parent=0 // pred_check
    _
  $region7: #{a_call__.2} parent=0 // pred_check_branch
    %12 = sbr.rel (0) target = $region9
  $region8: #{a_call__.2} parent=0 // pred_region
    _
  $region9: #{a_call__.2} parent=0 // pred_fallthru
    _
  // Predicated region
  $region10: #{a_call__.2} parent=0 // pred_check
    _
  $region11: #{a_call__.2} parent=0 // pred_check_branch
    %14 = sbr.rel (0) target = $region13
  $region12: #{a_call__.2} parent=0 // pred_region
    _
  $region13: #{a_call__.2} parent=0 // pred_fallthru
    _
  // Predicated region
  $region14: #{a_call__.2} parent=0 // pred_check
    _
  $region15: #{a_call__.2} parent=0 // pred_check_branch
    %16 = sbr.rel (0) target = $region17
  $region16: #{a_call__.2} parent=0 // pred_region
    _
  $region17: #{a_call__.2} parent=0 // pred_fallthru
    _
  %v17 = vld [vmem:[%s0] sm:$0xff]
  %v18 = vld [vmem:[%s0 + $0x8] sm:$0xff]
  %v19 = vld [vmem:[%s0 + $0x10] sm:$0xff]
  %v20 = vld [vmem:[%s0 + $0x18] sm:$0xff]
  %v21 = vld [vmem:[%s0 + $0x20] sm:$0xff]
  %v22 = vld [vmem:[%s0 + $0x28] sm:$0xff]
  %v23 = vld [vmem:[%s0 + $0x30] sm:$0xff]
  %v24 = vld [vmem:[%s0 + $0x38] sm:$0xff]
  %v25 = vld [vmem:[%s0 + $0x40] sm:$0xff]
  %v26 = vld [vmem:[%s0 + $0x48] sm:$0xff]
  %v27 = vld [vmem:[%s0 + $0x50] sm:$0xff]
  %v28 = vld [vmem:[%s0 + $0x58] sm:$0xff]
  %v29 = vld [vmem:[%s0 + $0x60] sm:$0xff]
  %v30 = vld [vmem:[%s0 + $0x68] sm:$0xff]
  %v31 = vld [vmem:[%s0 + $0x70] sm:$0xff]
  %v32 = vld [vmem:[%s0 + $0x78] sm:$0xff]
  %v33 = vld [vmem:[%s0 + $0x80] sm:$0xff]
  %v34 = vld [vmem:[%s0 + $0x88] sm:$0xff]
  %v35 = vld [vmem:[%s0 + $0x90] sm:$0xff]
  %v36 = vld [vmem:[%s0 + $0x98] sm:$0xff]
  %v37 = vld [vmem:[%s0 + $0xa0] sm:$0xff]
  %v38 = vld [vmem:[%s0 + $0xa8] sm:$0xff]
  %v39 = vld [vmem:[%s0 + $0xb0] sm:$0xff]
  %v40 = vld [vmem:[%s0 + $0xb8] sm:$0xff]
  %v41 = vld [vmem:[%s0 + $0xc0] sm:$0xff]
  %v42 = vld [vmem:[%s0 + $0xc8] sm:$0xff]
  %v43 = vld [vmem:[%s0 + $0xd0] sm:$0xff]
  %v44 = vld [vmem:[%s0 + $0xd8] sm:$0xff]
  %v45 = vld [vmem:[%s0 + $0xe0] sm:$0xff]
  %v46 = vld [vmem:[%s0 + $0xe8] sm:$0xff]
  %v47 = vld [vmem:[%s0 + $0xf0] sm:$0xff]
  %v48 = vld [vmem:[%s0 + $0xf8] sm:$0xff]
  %v49 = vld [vmem:[%s0 + $0x100] sm:$0xff]
  %v50 = vld [vmem:[%s0 + $0x108] sm:$0xff]
  %v51 = vld [vmem:[%s0 + $0x110] sm:$0xff]
  %v52 = vld [vmem:[%s0 + $0x118] sm:$0xff]
  %v53 = vld [vmem:[%s0 + $0x120] sm:$0xff]
  %v54 = vld [vmem:[%s0 + $0x128] sm:$0xff]
  %v55 = vld [vmem:[%s0 + $0x130] sm:$0xff]
  %v56 = vld [vmem:[%s0 + $0x138] sm:$0xff]
  %v57 = vld [vmem:[%s0 + $0x140] sm:$0xff]
  %v58 = vld [vmem:[%s0 + $0x148] sm:$0xff]
  %v59 = vld [vmem:[%s0 + $0x150] sm:$0xff]
  %v60 = vld [vmem:[%s0 + $0x158] sm:$0xff]
  %v61 = vld [vmem:[%s0 + $0x160] sm:$0xff]
  %v62 = vld [vmem:[%s0 + $0x168] sm:$0xff]
  %v63 = vld [vmem:[%s0 + $0x170] sm:$0xff]
  %v64 = vld [vmem:[%s0 + $0x178] sm:$0xff]
  %v65 = vld [vmem:[%s0 + $0x180] sm:$0xff]
  %v66 = vld [vmem:[%s0 + $0x188] sm:$0xff]
  %v67 = vld [vmem:[%s0 + $0x190] sm:$0xff]
  %v68 = vld [vmem:[%s0 + $0x198] sm:$0xff]
  %v69 = vld [vmem:[%s0 + $0x1a0] sm:$0xff]
  %v70 = vld [vmem:[%s0 + $0x1a8] sm:$0xff]
  %v71 = vld [vmem:[%s0 + $0x1b0] sm:$0xff]
  %v72 = vld [vmem:[%s0 + $0x1b8] sm:$0xff]
  %v73 = vld [vmem:[%s0 + $0x1c0] sm:$0xff]
  %v74 = vld [vmem:[%s0 + $0x1c8] sm:$0xff]
  %v75 = vld [vmem:[%s0 + $0x1d0] sm:$0xff]
  %v76 = vld [vmem:[%s0 + $0x1d8] sm:$0xff]
  %v77 = vld [vmem:[%s0 + $0x1e0] sm:$0xff]
  %v78 = vld [vmem:[%s0 + $0x1e8] sm:$0xff]
  %v79 = vld [vmem:[%s0 + $0x1f0] sm:$0xff]
  %v80 = vld [vmem:[%s0 + $0x1f8] sm:$0xff]
  %v81 = vld [vmem:[%s1] sm:$0xf]
  %vm82 = vcmask 31744
  %v84 = vsel %vm82, %v17, 0
  %v87 = vsel %vm82, %v18, 0
  %v90 = vsel %vm82, %v19, 0
  %v93 = vsel %vm82, %v20, 0
  %v96 = vsel %vm82, %v21, 0
  %v99 = vsel %vm82, %v22, 0
  %v102 = vsel %vm82, %v23, 0
  %v105 = vsel %vm82, %v24, 0
  %v108 = vsel %vm82, %v25, 0
  %v111 = vsel %vm82, %v26, 0
  %v114 = vsel %vm82, %v27, 0
  %v117 = vsel %vm82, %v28, 0
  %v120 = vsel %vm82, %v29, 0
  %v123 = vsel %vm82, %v30, 0
  %v126 = vsel %vm82, %v31, 0
  %v129 = vsel %vm82, %v32, 0
  %v132 = vsel %vm82, %v33, 0
  %v135 = vsel %vm82, %v34, 0
  %v138 = vsel %vm82, %v35, 0
  %v141 = vsel %vm82, %v36, 0
  %v144 = vsel %vm82, %v37, 0
  %v147 = vsel %vm82, %v38, 0
  %v150 = vsel %vm82, %v39, 0
  %v153 = vsel %vm82, %v40, 0
  %v156 = vsel %vm82, %v41, 0
  %v159 = vsel %vm82, %v42, 0
  %v162 = vsel %vm82, %v43, 0
  %v165 = vsel %vm82, %v44, 0
  %v168 = vsel %vm82, %v45, 0
  %v171 = vsel %vm82, %v46, 0
  %v174 = vsel %vm82, %v47, 0
  %v177 = vsel %vm82, %v48, 0
  %v180 = vsel %vm82, %v49, 0
  %v183 = vsel %vm82, %v50, 0
  %v186 = vsel %vm82, %v51, 0
  %v189 = vsel %vm82, %v52, 0
  %v192 = vsel %vm82, %v53, 0
  %v195 = vsel %vm82, %v54, 0
  %v198 = vsel %vm82, %v55, 0
  %v201 = vsel %vm82, %v56, 0
  %v204 = vsel %vm82, %v57, 0
  %v207 = vsel %vm82, %v58, 0
  %v210 = vsel %vm82, %v59, 0
  %v213 = vsel %vm82, %v60, 0
  %v216 = vsel %vm82, %v61, 0
  %v219 = vsel %vm82, %v62, 0
  %v222 = vsel %vm82, %v63, 0
  %v225 = vsel %vm82, %v64, 0
  %v228 = vsel %vm82, %v65, 0
  %v231 = vsel %vm82, %v66, 0
  %v234 = vsel %vm82, %v67, 0
  %v237 = vsel %vm82, %v68, 0
  %v240 = vsel %vm82, %v69, 0
  %v243 = vsel %vm82, %v70, 0
  %v246 = vsel %vm82, %v71, 0
  %v249 = vsel %vm82, %v72, 0
  %v252 = vsel %vm82, %v73, 0
  %v255 = vsel %vm82, %v74, 0
  %v258 = vsel %vm82, %v75, 0
  %v261 = vsel %vm82, %v76, 0
  %v264 = vsel %vm82, %v77, 0
  %v267 = vsel %vm82, %v78, 0
  %v270 = vsel %vm82, %v79, 0
  %v273 = vsel %vm82, %v80, 0
  %vm275 = vcmask 1043456
  %v277 = vsel %vm275, %v81, 0
  %279 = vmatprep.subr.mxu0 0.0
  %280 = vmatpush1.msra.mxu0 %v277
  %281 = vmatprep.subr.mxu0 0.0
  %282 = vmatpush1.msra.mxu0 0.0
  %283 = vmatprep.subr.mxu0 0.0
  %284 = vmatpush1.msra.mxu0 0.0
  %285 = vmatprep.subr.mxu0 0.0
  %286 = vmatpush1.msra.mxu0 0.0
  %287 = vmatprep.subr.mxu0 0.0
  %288 = vmatpush1.msra.mxu0 0.0
  %289 = vmatprep.subr.mxu0 0.0
  %290 = vmatpush1.msra.mxu0 0.0
  %291 = vmatprep.subr.mxu0 0.0
  %292 = vmatpush1.msra.mxu0 0.0
  %293 = vmatprep.subr.mxu0 0.0
  %294 = vmatpush1.msra.mxu0 0.0
  %295 = vmatprep.subr.mxu0 0.0
  %296 = vmatpush1.msra.mxu0 0.0
  %297 = vmatprep.subr.mxu0 0.0
  %298 = vmatpush1.msra.mxu0 0.0
  %299 = vmatprep.subr.mxu0 0.0
  %300 = vmatpush1.msra.mxu0 0.0
  %301 = vmatprep.subr.mxu0 0.0
  %302 = vmatpush1.msra.mxu0 0.0
  %303 = vmatprep.subr.mxu0 0.0
  %304 = vmatpush1.msra.mxu0 0.0
  %305 = vmatprep.subr.mxu0 0.0
  %306 = vmatpush1.msra.mxu0 0.0
  %307 = vmatprep.subr.mxu0 0.0
  %308 = vmatpush1.msra.mxu0 0.0
  %309 = vmatprep.subr.mxu0 0.0
  %310 = vmatpush1.msra.mxu0 0.0
  %311 = vmatprep.subr.mxu0 0.0
  %312 = vmatpush1.msra.mxu0 0.0
  %313 = vmatprep.subr.mxu0 0.0
  %314 = vmatpush1.msra.mxu0 0.0
  %315 = vmatprep.subr.mxu0 0.0
  %316 = vmatpush1.msra.mxu0 0.0
  %317 = vmatprep.subr.mxu0 0.0
  %318 = vmatpush1.msra.mxu0 0.0
  %319 = vmatprep.subr.mxu0 0.0
  %320 = vmatpush1.msra.mxu0 0.0
  %321 = vmatprep.subr.mxu0 0.0
  %322 = vmatpush1.msra.mxu0 0.0
  %323 = vmatprep.subr.mxu0 0.0
  %324 = vmatpush1.msra.mxu0 0.0
  %325 = vmatprep.subr.mxu0 0.0
  %326 = vmatpush1.msra.mxu0 0.0
  %327 = vmatprep.subr.mxu0 0.0
  %328 = vmatpush1.msra.mxu0 0.0
  %329 = vmatprep.subr.mxu0 0.0
  %330 = vmatpush1.msra.mxu0 0.0
  %331 = vmatprep.subr.mxu0 0.0
  %332 = vmatpush1.msra.mxu0 0.0
  %333 = vmatprep.subr.mxu0 0.0
  %334 = vmatpush1.msra.mxu0 0.0
  %335 = vmatprep.subr.mxu0 0.0
  %336 = vmatpush1.msra.mxu0 0.0
  %337 = vmatprep.subr.mxu0 0.0
  %338 = vmatpush1.msra.mxu0 0.0
  %339 = vmatprep.subr.mxu0 0.0
  %340 = vmatpush1.msra.mxu0 0.0
  %341 = vmatprep.subr.mxu0 0.0
  %342 = vmatpush1.msra.mxu0 0.0
  %343 = vmatprep.mubr.f32.mxu0 0.0
  %344 = vmatmul.mubr.f32.gmra.mrb[0].mxu0 %v84
  %v345 = vpop.f32.mrb[0].mxu0
  %v346 = vadd.f32 0.0, %v345
  %v347 = vpop.f32.mrb[0].mxu0
  %348 = vmatprep.mubr.f32.mxu0 0.0
  %349 = vmatmul.mubr.f32.gmra.mrb[0].mxu0 %v87
  %v350 = vpop.f32.mrb[0].mxu0
  %v351 = vadd.f32 0.0, %v350
  %v352 = vpop.f32.mrb[0].mxu0
  %353 = vmatprep.mubr.f32.mxu0 0.0
  %354 = vmatmul.mubr.f32.gmra.mrb[0].mxu0 %v90
  %v355 = vpop.f32.mrb[0].mxu0
  %v356 = vadd.f32 0.0, %v355
  %v357 = vpop.f32.mrb[0].mxu0
  %358 = vmatprep.mubr.f32.mxu0 0.0
  %359 = vmatmul.mubr.f32.gmra.mrb[0].mxu0 %v93
  %v360 = vpop.f32.mrb[0].mxu0
  %v361 = vadd.f32 0.0, %v360
  %v362 = vpop.f32.mrb[0].mxu0
  %363 = vmatprep.mubr.f32.mxu0 0.0
  %364 = vmatmul.mubr.f32.gmra.mrb[0].mxu0 %v96
  %v365 = vpop.f32.mrb[0].mxu0
  %v366 = vadd.f32 0.0, %v365
  %v367 = vpop.f32.mrb[0].mxu0
  %368 = vmatprep.mubr.f32.mxu0 0.0
  %369 = vmatmul.mubr.f32.gmra.mrb[0].mxu0 %v99
  %v370 = vpop.f32.mrb[0].mxu0
  %v371 = vadd.f32 0.0, %v370
  %v372 = vpop.f32.mrb[0].mxu0
  %373 = vmatprep.mubr.f32.mxu0 0.0
  %374 = vmatmul.mubr.f32.gmra.mrb[0].mxu0 %v102
  %v375 = vpop.f32.mrb[0].mxu0
  %v376 = vadd.f32 0.0, %v375
  %v377 = vpop.f32.mrb[0].mxu0
  %378 = vmatprep.mubr.f32.mxu0 0.0
  %379 = vmatmul.mubr.f32.gmra.mrb[0].mxu0 %v105
  %v380 = vpop.f32.mrb[0].mxu0
  %v381 = vadd.f32 0.0, %v380
  %v382 = vpop.f32.mrb[0].mxu0
  %383 = vmatprep.mubr.f32.mxu0 0.0
  %384 = vmatmul.mubr.f32.gmra.mrb[0].mxu0 %v108
  %v385 = vpop.f32.mrb[0].mxu0
  %v386 = vadd.f32 0.0, %v385
  %v387 = vpop.f32.mrb[0].mxu0
  %388 = vmatprep.mubr.f32.mxu0 0.0
  %389 = vmatmul.mubr.f32.gmra.mrb[0].mxu0 %v111
  %v390 = vpop.f32.mrb[0].mxu0
  %v391 = vadd.f32 0.0, %v390
  %v392 = vpop.f32.mrb[0].mxu0
  %393 = vmatprep.mubr.f32.mxu0 0.0
  %394 = vmatmul.mubr.f32.gmra.mrb[0].mxu0 %v114
  %v395 = vpop.f32.mrb[0].mxu0
  %v396 = vadd.f32 0.0, %v395
  %v397 = vpop.f32.mrb[0].mxu0
  %398 = vmatprep.mubr.f32.mxu0 0.0
  %399 = vmatmul.mubr.f32.gmra.mrb[0].mxu0 %v117
  %v400 = vpop.f32.mrb[0].mxu0
  %v401 = vadd.f32 0.0, %v400
  %v402 = vpop.f32.mrb[0].mxu0
  %403 = vmatprep.mubr.f32.mxu0 0.0
  %404 = vmatmul.mubr.f32.gmra.mrb[0].mxu0 %v120
  %v405 = vpop.f32.mrb[0].mxu0
  %v406 = vadd.f32 0.0, %v405
  %v407 = vpop.f32.mrb[0].mxu0
  %408 = vmatprep.mubr.f32.mxu0 0.0
  %409 = vmatmul.mubr.f32.gmra.mrb[0].mxu0 %v123
  %v410 = vpop.f32.mrb[0].mxu0
  %v411 = vadd.f32 0.0, %v410
  %v412 = vpop.f32.mrb[0].mxu0
  %413 = vmatprep.mubr.f32.mxu0 0.0
  %414 = vmatmul.mubr.f32.gmra.mrb[0].mxu0 %v126
  %v415 = vpop.f32.mrb[0].mxu0
  %v416 = vadd.f32 0.0, %v415
  %v417 = vpop.f32.mrb[0].mxu0
  %418 = vmatprep.mubr.f32.mxu0 0.0
  %419 = vmatmul.mubr.f32.gmra.mrb[0].mxu0 %v129
  %v420 = vpop.f32.mrb[0].mxu0
  %v421 = vadd.f32 0.0, %v420
  %v422 = vpop.f32.mrb[0].mxu0
  %423 = vmatprep.mubr.f32.mxu0 0.0
  %424 = vmatmul.mubr.f32.gmra.mrb[0].mxu0 %v132
  %v425 = vpop.f32.mrb[0].mxu0
  %v426 = vadd.f32 0.0, %v425
  %v427 = vpop.f32.mrb[0].mxu0
  %428 = vmatprep.mubr.f32.mxu0 0.0
  %429 = vmatmul.mubr.f32.gmra.mrb[0].mxu0 %v135
  %v430 = vpop.f32.mrb[0].mxu0
  %v431 = vadd.f32 0.0, %v430
  %v432 = vpop.f32.mrb[0].mxu0
  %433 = vmatprep.mubr.f32.mxu0 0.0
  %434 = vmatmul.mubr.f32.gmra.mrb[0].mxu0 %v138
  %v435 = vpop.f32.mrb[0].mxu0
  %v436 = vadd.f32 0.0, %v435
  %v437 = vpop.f32.mrb[0].mxu0
  %438 = vmatprep.mubr.f32.mxu0 0.0
  %439 = vmatmul.mubr.f32.gmra.mrb[0].mxu0 %v141
  %v440 = vpop.f32.mrb[0].mxu0
  %v441 = vadd.f32 0.0, %v440
  %v442 = vpop.f32.mrb[0].mxu0
  %443 = vmatprep.mubr.f32.mxu0 0.0
  %444 = vmatmul.mubr.f32.gmra.mrb[0].mxu0 %v144
  %v445 = vpop.f32.mrb[0].mxu0
  %v446 = vadd.f32 0.0, %v445
  %v447 = vpop.f32.mrb[0].mxu0
  %448 = vmatprep.mubr.f32.mxu0 0.0
  %449 = vmatmul.mubr.f32.gmra.mrb[0].mxu0 %v147
  %v450 = vpop.f32.mrb[0].mxu0
  %v451 = vadd.f32 0.0, %v450
  %v452 = vpop.f32.mrb[0].mxu0
  %453 = vmatprep.mubr.f32.mxu0 0.0
  %454 = vmatmul.mubr.f32.gmra.mrb[0].mxu0 %v150
  %v455 = vpop.f32.mrb[0].mxu0
  %v456 = vadd.f32 0.0, %v455
  %v457 = vpop.f32.mrb[0].mxu0
  %458 = vmatprep.mubr.f32.mxu0 0.0
  %459 = vmatmul.mubr.f32.gmra.mrb[0].mxu0 %v153
  %v460 = vpop.f32.mrb[0].mxu0
  %v461 = vadd.f32 0.0, %v460
  %v462 = vpop.f32.mrb[0].mxu0
  %463 = vmatprep.mubr.f32.mxu0 0.0
  %464 = vmatmul.mubr.f32.gmra.mrb[0].mxu0 %v156
  %v465 = vpop.f32.mrb[0].mxu0
  %v466 = vadd.f32 0.0, %v465
  %v467 = vpop.f32.mrb[0].mxu0
  %468 = vmatprep.mubr.f32.mxu0 0.0
  %469 = vmatmul.mubr.f32.gmra.mrb[0].mxu0 %v159
  %v470 = vpop.f32.mrb[0].mxu0
  %v471 = vadd.f32 0.0, %v470
  %v472 = vpop.f32.mrb[0].mxu0
  %473 = vmatprep.mubr.f32.mxu0 0.0
  %474 = vmatmul.mubr.f32.gmra.mrb[0].mxu0 %v162
  %v475 = vpop.f32.mrb[0].mxu0
  %v476 = vadd.f32 0.0, %v475
  %v477 = vpop.f32.mrb[0].mxu0
  %478 = vmatprep.mubr.f32.mxu0 0.0
  %479 = vmatmul.mubr.f32.gmra.mrb[0].mxu0 %v165
  %v480 = vpop.f32.mrb[0].mxu0
  %v481 = vadd.f32 0.0, %v480
  %v482 = vpop.f32.mrb[0].mxu0
  %483 = vmatprep.mubr.f32.mxu0 0.0
  %484 = vmatmul.mubr.f32.gmra.mrb[0].mxu0 %v168
  %v485 = vpop.f32.mrb[0].mxu0
  %v486 = vadd.f32 0.0, %v485
  %v487 = vpop.f32.mrb[0].mxu0
  %488 = vmatprep.mubr.f32.mxu0 0.0
  %489 = vmatmul.mubr.f32.gmra.mrb[0].mxu0 %v171
  %v490 = vpop.f32.mrb[0].mxu0
  %v491 = vadd.f32 0.0, %v490
  %v492 = vpop.f32.mrb[0].mxu0
  %493 = vmatprep.mubr.f32.mxu0 0.0
  %494 = vmatmul.mubr.f32.gmra.mrb[0].mxu0 %v174
  %v495 = vpop.f32.mrb[0].mxu0
  %v496 = vadd.f32 0.0, %v495
  %v497 = vpop.f32.mrb[0].mxu0
  %498 = vmatprep.mubr.f32.mxu0 0.0
  %499 = vmatmul.mubr.f32.gmra.mrb[0].mxu0 %v177
  %v500 = vpop.f32.mrb[0].mxu0
  %v501 = vadd.f32 0.0, %v500
  %v502 = vpop.f32.mrb[0].mxu0
  %503 = vmatprep.mubr.f32.mxu0 0.0
  %504 = vmatmul.mubr.f32.gmra.mrb[0].mxu0 %v180
  %v505 = vpop.f32.mrb[0].mxu0
  %v506 = vadd.f32 0.0, %v505
  %v507 = vpop.f32.mrb[0].mxu0
  %508 = vmatprep.mubr.f32.mxu0 0.0
  %509 = vmatmul.mubr.f32.gmra.mrb[0].mxu0 %v183
  %v510 = vpop.f32.mrb[0].mxu0
  %v511 = vadd.f32 0.0, %v510
  %v512 = vpop.f32.mrb[0].mxu0
  %513 = vmatprep.mubr.f32.mxu0 0.0
  %514 = vmatmul.mubr.f32.gmra.mrb[0].mxu0 %v186
  %v515 = vpop.f32.mrb[0].mxu0
  %v516 = vadd.f32 0.0, %v515
  %v517 = vpop.f32.mrb[0].mxu0
  %518 = vmatprep.mubr.f32.mxu0 0.0
  %519 = vmatmul.mubr.f32.gmra.mrb[0].mxu0 %v189
  %v520 = vpop.f32.mrb[0].mxu0
  %v521 = vadd.f32 0.0, %v520
  %v522 = vpop.f32.mrb[0].mxu0
  %523 = vmatprep.mubr.f32.mxu0 0.0
  %524 = vmatmul.mubr.f32.gmra.mrb[0].mxu0 %v192
  %v525 = vpop.f32.mrb[0].mxu0
  %v526 = vadd.f32 0.0, %v525
  %v527 = vpop.f32.mrb[0].mxu0
  %528 = vmatprep.mubr.f32.mxu0 0.0
  %529 = vmatmul.mubr.f32.gmra.mrb[0].mxu0 %v195
  %v530 = vpop.f32.mrb[0].mxu0
  %v531 = vadd.f32 0.0, %v530
  %v532 = vpop.f32.mrb[0].mxu0
  %533 = vmatprep.mubr.f32.mxu0 0.0
  %534 = vmatmul.mubr.f32.gmra.mrb[0].mxu0 %v198
  %v535 = vpop.f32.mrb[0].mxu0
  %v536 = vadd.f32 0.0, %v535
  %v537 = vpop.f32.mrb[0].mxu0
  %538 = vmatprep.mubr.f32.mxu0 0.0
  %539 = vmatmul.mubr.f32.gmra.mrb[0].mxu0 %v201
  %v540 = vpop.f32.mrb[0].mxu0
  %v541 = vadd.f32 0.0, %v540
  %v542 = vpop.f32.mrb[0].mxu0
  %543 = vmatprep.mubr.f32.mxu0 0.0
  %544 = vmatmul.mubr.f32.gmra.mrb[0].mxu0 %v204
  %v545 = vpop.f32.mrb[0].mxu0
  %v546 = vadd.f32 0.0, %v545
  %v547 = vpop.f32.mrb[0].mxu0
  %548 = vmatprep.mubr.f32.mxu0 0.0
  %549 = vmatmul.mubr.f32.gmra.mrb[0].mxu0 %v207
  %v550 = vpop.f32.mrb[0].mxu0
  %v551 = vadd.f32 0.0, %v550
  %v552 = vpop.f32.mrb[0].mxu0
  %553 = vmatprep.mubr.f32.mxu0 0.0
  %554 = vmatmul.mubr.f32.gmra.mrb[0].mxu0 %v210
  %v555 = vpop.f32.mrb[0].mxu0
  %v556 = vadd.f32 0.0, %v555
  %v557 = vpop.f32.mrb[0].mxu0
  %558 = vmatprep.mubr.f32.mxu0 0.0
  %559 = vmatmul.mubr.f32.gmra.mrb[0].mxu0 %v213
  %v560 = vpop.f32.mrb[0].mxu0
  %v561 = vadd.f32 0.0, %v560
  %v562 = vpop.f32.mrb[0].mxu0
  %563 = vmatprep.mubr.f32.mxu0 0.0
  %564 = vmatmul.mubr.f32.gmra.mrb[0].mxu0 %v216
  %v565 = vpop.f32.mrb[0].mxu0
  %v566 = vadd.f32 0.0, %v565
  %v567 = vpop.f32.mrb[0].mxu0
  %568 = vmatprep.mubr.f32.mxu0 0.0
  %569 = vmatmul.mubr.f32.gmra.mrb[0].mxu0 %v219
  %v570 = vpop.f32.mrb[0].mxu0
  %v571 = vadd.f32 0.0, %v570
  %v572 = vpop.f32.mrb[0].mxu0
  %573 = vmatprep.mubr.f32.mxu0 0.0
  %574 = vmatmul.mubr.f32.gmra.mrb[0].mxu0 %v222
  %v575 = vpop.f32.mrb[0].mxu0
  %v576 = vadd.f32 0.0, %v575
  %v577 = vpop.f32.mrb[0].mxu0
  %578 = vmatprep.mubr.f32.mxu0 0.0
  %579 = vmatmul.mubr.f32.gmra.mrb[0].mxu0 %v225
  %v580 = vpop.f32.mrb[0].mxu0
  %v581 = vadd.f32 0.0, %v580
  %v582 = vpop.f32.mrb[0].mxu0
  %583 = vmatprep.mubr.f32.mxu0 0.0
  %584 = vmatmul.mubr.f32.gmra.mrb[0].mxu0 %v228
  %v585 = vpop.f32.mrb[0].mxu0
  %v586 = vadd.f32 0.0, %v585
  %v587 = vpop.f32.mrb[0].mxu0
  %588 = vmatprep.mubr.f32.mxu0 0.0
  %589 = vmatmul.mubr.f32.gmra.mrb[0].mxu0 %v231
  %v590 = vpop.f32.mrb[0].mxu0
  %v591 = vadd.f32 0.0, %v590
  %v592 = vpop.f32.mrb[0].mxu0
  %593 = vmatprep.mubr.f32.mxu0 0.0
  %594 = vmatmul.mubr.f32.gmra.mrb[0].mxu0 %v234
  %v595 = vpop.f32.mrb[0].mxu0
  %v596 = vadd.f32 0.0, %v595
  %v597 = vpop.f32.mrb[0].mxu0
  %598 = vmatprep.mubr.f32.mxu0 0.0
  %599 = vmatmul.mubr.f32.gmra.mrb[0].mxu0 %v237
  %v600 = vpop.f32.mrb[0].mxu0
  %v601 = vadd.f32 0.0, %v600
  %v602 = vpop.f32.mrb[0].mxu0
  %603 = vmatprep.mubr.f32.mxu0 0.0
  %604 = vmatmul.mubr.f32.gmra.mrb[0].mxu0 %v240
  %v605 = vpop.f32.mrb[0].mxu0
  %v606 = vadd.f32 0.0, %v605
  %v607 = vpop.f32.mrb[0].mxu0
  %608 = vmatprep.mubr.f32.mxu0 0.0
  %609 = vmatmul.mubr.f32.gmra.mrb[0].mxu0 %v243
  %v610 = vpop.f32.mrb[0].mxu0
  %v611 = vadd.f32 0.0, %v610
  %v612 = vpop.f32.mrb[0].mxu0
  %613 = vmatprep.mubr.f32.mxu0 0.0
  %614 = vmatmul.mubr.f32.gmra.mrb[0].mxu0 %v246
  %v615 = vpop.f32.mrb[0].mxu0
  %v616 = vadd.f32 0.0, %v615
  %v617 = vpop.f32.mrb[0].mxu0
  %618 = vmatprep.mubr.f32.mxu0 0.0
  %619 = vmatmul.mubr.f32.gmra.mrb[0].mxu0 %v249
  %v620 = vpop.f32.mrb[0].mxu0
  %v621 = vadd.f32 0.0, %v620
  %v622 = vpop.f32.mrb[0].mxu0
  %623 = vmatprep.mubr.f32.mxu0 0.0
  %624 = vmatmul.mubr.f32.gmra.mrb[0].mxu0 %v252
  %v625 = vpop.f32.mrb[0].mxu0
  %v626 = vadd.f32 0.0, %v625
  %v627 = vpop.f32.mrb[0].mxu0
  %628 = vmatprep.mubr.f32.mxu0 0.0
  %629 = vmatmul.mubr.f32.gmra.mrb[0].mxu0 %v255
  %v630 = vpop.f32.mrb[0].mxu0
  %v631 = vadd.f32 0.0, %v630
  %v632 = vpop.f32.mrb[0].mxu0
  %633 = vmatprep.mubr.f32.mxu0 0.0
  %634 = vmatmul.mubr.f32.gmra.mrb[0].mxu0 %v258
  %v635 = vpop.f32.mrb[0].mxu0
  %v636 = vadd.f32 0.0, %v635
  %v637 = vpop.f32.mrb[0].mxu0
  %638 = vmatprep.mubr.f32.mxu0 0.0
  %639 = vmatmul.mubr.f32.gmra.mrb[0].mxu0 %v261
  %v640 = vpop.f32.mrb[0].mxu0
  %v641 = vadd.f32 0.0, %v640
  %v642 = vpop.f32.mrb[0].mxu0
  %643 = vmatprep.mubr.f32.mxu0 0.0
  %644 = vmatmul.mubr.f32.gmra.mrb[0].mxu0 %v264
  %v645 = vpop.f32.mrb[0].mxu0
  %v646 = vadd.f32 0.0, %v645
  %v647 = vpop.f32.mrb[0].mxu0
  %648 = vmatprep.mubr.f32.mxu0 0.0
  %649 = vmatmul.mubr.f32.gmra.mrb[0].mxu0 %v267
  %v650 = vpop.f32.mrb[0].mxu0
  %v651 = vadd.f32 0.0, %v650
  %v652 = vpop.f32.mrb[0].mxu0
  %653 = vmatprep.mubr.f32.mxu0 0.0
  %654 = vmatmul.mubr.f32.gmra.mrb[0].mxu0 %v270
  %v655 = vpop.f32.mrb[0].mxu0
  %v656 = vadd.f32 0.0, %v655
  %v657 = vpop.f32.mrb[0].mxu0
  %658 = vmatprep.mubr.f32.mxu0 0.0
  %659 = vmatmul.mubr.f32.gmra.mrb[0].mxu0 %v273
  %v660 = vpop.f32.mrb[0].mxu0
  %v661 = vadd.f32 0.0, %v660
  %v662 = vpop.f32.mrb[0].mxu0
  %663 = vdwg.mxu0
  %v664 = vld [vmem:[%s2] sm:$0x1]
  %v666 = vlaneseq
  %v667 = vshrl.u32 %v666, 7
  %v668 = vsub.s32 0, %v667
  %v669 = vrot.slane %v664, %v668
  %v671 = vmul.f32 %v346, %v669
  %v672 = vmul.f32 %v351, %v669
  %v673 = vmul.f32 %v356, %v669
  %v674 = vmul.f32 %v361, %v669
  %v675 = vmul.f32 %v366, %v669
  %v676 = vmul.f32 %v371, %v669
  %v677 = vmul.f32 %v376, %v669
  %v678 = vmul.f32 %v381, %v669
  %v679 = vmul.f32 %v386, %v669
  %v680 = vmul.f32 %v391, %v669
  %v681 = vmul.f32 %v396, %v669
  %v682 = vmul.f32 %v401, %v669
  %v683 = vmul.f32 %v406, %v669
  %v684 = vmul.f32 %v411, %v669
  %v685 = vmul.f32 %v416, %v669
  %v686 = vmul.f32 %v421, %v669
  %v687 = vmul.f32 %v426, %v669
  %v688 = vmul.f32 %v431, %v669
  %v689 = vmul.f32 %v436, %v669
  %v690 = vmul.f32 %v441, %v669
  %v691 = vmul.f32 %v446, %v669
  %v692 = vmul.f32 %v451, %v669
  %v693 = vmul.f32 %v456, %v669
  %v694 = vmul.f32 %v461, %v669
  %v695 = vmul.f32 %v466, %v669
  %v696 = vmul.f32 %v471, %v669
  %v697 = vmul.f32 %v476, %v669
  %v698 = vmul.f32 %v481, %v669
  %v699 = vmul.f32 %v486, %v669
  %v700 = vmul.f32 %v491, %v669
  %v701 = vmul.f32 %v496, %v669
  %v702 = vmul.f32 %v501, %v669
  %v703 = vmul.f32 %v506, %v669
  %v704 = vmul.f32 %v511, %v669
  %v705 = vmul.f32 %v516, %v669
  %v706 = vmul.f32 %v521, %v669
  %v707 = vmul.f32 %v526, %v669
  %v708 = vmul.f32 %v531, %v669
  %v709 = vmul.f32 %v536, %v669
  %v710 = vmul.f32 %v541, %v669
  %v711 = vmul.f32 %v546, %v669
  %v712 = vmul.f32 %v551, %v669
  %v713 = vmul.f32 %v556, %v669
  %v714 = vmul.f32 %v561, %v669
  %v715 = vmul.f32 %v566, %v669
  %v716 = vmul.f32 %v571, %v669
  %v717 = vmul.f32 %v576, %v669
  %v718 = vmul.f32 %v581, %v669
  %v719 = vmul.f32 %v586, %v669
  %v720 = vmul.f32 %v591, %v669
  %v721 = vmul.f32 %v596, %v669
  %v722 = vmul.f32 %v601, %v669
  %v723 = vmul.f32 %v606, %v669
  %v724 = vmul.f32 %v611, %v669
  %v725 = vmul.f32 %v616, %v669
  %v726 = vmul.f32 %v621, %v669
  %v727 = vmul.f32 %v626, %v669
  %v728 = vmul.f32 %v631, %v669
  %v729 = vmul.f32 %v636, %v669
  %v730 = vmul.f32 %v641, %v669
  %v731 = vmul.f32 %v646, %v669
  %v732 = vmul.f32 %v651, %v669
  %v733 = vmul.f32 %v656, %v669
  %v734 = vmul.f32 %v661, %v669
  %v735 = vld [vmem:[%s3] sm:$0x1]
  %v737 = vlaneseq
  %v738 = vshrl.u32 %v737, 7
  %v739 = vsub.s32 0, %v738
  %v740 = vrot.slane %v735, %v739
  %v742 = vadd.f32 %v671, %v740
  %v743 = vadd.f32 %v672, %v740
  %v744 = vadd.f32 %v673, %v740
  %v745 = vadd.f32 %v674, %v740
  %v746 = vadd.f32 %v675, %v740
  %v747 = vadd.f32 %v676, %v740
  %v748 = vadd.f32 %v677, %v740
  %v749 = vadd.f32 %v678, %v740
  %v750 = vadd.f32 %v679, %v740
  %v751 = vadd.f32 %v680, %v740
  %v752 = vadd.f32 %v681, %v740
  %v753 = vadd.f32 %v682, %v740
  %v754 = vadd.f32 %v683, %v740
  %v755 = vadd.f32 %v684, %v740
  %v756 = vadd.f32 %v685, %v740
  %v757 = vadd.f32 %v686, %v740
  %v758 = vadd.f32 %v687, %v740
  %v759 = vadd.f32 %v688, %v740
  %v760 = vadd.f32 %v689, %v740
  %v761 = vadd.f32 %v690, %v740
  %v762 = vadd.f32 %v691, %v740
  %v763 = vadd.f32 %v692, %v740
  %v764 = vadd.f32 %v693, %v740
  %v765 = vadd.f32 %v694, %v740
  %v766 = vadd.f32 %v695, %v740
  %v767 = vadd.f32 %v696, %v740
  %v768 = vadd.f32 %v697, %v740
  %v769 = vadd.f32 %v698, %v740
  %v770 = vadd.f32 %v699, %v740
  %v771 = vadd.f32 %v700, %v740
  %v772 = vadd.f32 %v701, %v740
  %v773 = vadd.f32 %v702, %v740
  %v774 = vadd.f32 %v703, %v740
  %v775 = vadd.f32 %v704, %v740
  %v776 = vadd.f32 %v705, %v740
  %v777 = vadd.f32 %v706, %v740
  %v778 = vadd.f32 %v707, %v740
  %v779 = vadd.f32 %v708, %v740
  %v780 = vadd.f32 %v709, %v740
  %v781 = vadd.f32 %v710, %v740
  %v782 = vadd.f32 %v711, %v740
  %v783 = vadd.f32 %v712, %v740
  %v784 = vadd.f32 %v713, %v740
  %v785 = vadd.f32 %v714, %v740
  %v786 = vadd.f32 %v715, %v740
  %v787 = vadd.f32 %v716, %v740
  %v788 = vadd.f32 %v717, %v740
  %v789 = vadd.f32 %v718, %v740
  %v790 = vadd.f32 %v719, %v740
  %v791 = vadd.f32 %v720, %v740
  %v792 = vadd.f32 %v721, %v740
  %v793 = vadd.f32 %v722, %v740
  %v794 = vadd.f32 %v723, %v740
  %v795 = vadd.f32 %v724, %v740
  %v796 = vadd.f32 %v725, %v740
  %v797 = vadd.f32 %v726, %v740
  %v798 = vadd.f32 %v727, %v740
  %v799 = vadd.f32 %v728, %v740
  %v800 = vadd.f32 %v729, %v740
  %v801 = vadd.f32 %v730, %v740
  %v802 = vadd.f32 %v731, %v740
  %v803 = vadd.f32 %v732, %v740
  %v804 = vadd.f32 %v733, %v740
  %v805 = vadd.f32 %v734, %v740
  %v806 = vmax.f32 %v742, 0.0
  %v807 = vmax.f32 %v743, 0.0
  %v808 = vmax.f32 %v744, 0.0
  %v809 = vmax.f32 %v745, 0.0
  %v810 = vmax.f32 %v746, 0.0
  %v811 = vmax.f32 %v747, 0.0
  %v812 = vmax.f32 %v748, 0.0
  %v813 = vmax.f32 %v749, 0.0
  %v814 = vmax.f32 %v750, 0.0
  %v815 = vmax.f32 %v751, 0.0
  %v816 = vmax.f32 %v752, 0.0
  %v817 = vmax.f32 %v753, 0.0
  %v818 = vmax.f32 %v754, 0.0
  %v819 = vmax.f32 %v755, 0.0
  %v820 = vmax.f32 %v756, 0.0
  %v821 = vmax.f32 %v757, 0.0
  %v822 = vmax.f32 %v758, 0.0
  %v823 = vmax.f32 %v759, 0.0
  %v824 = vmax.f32 %v760, 0.0
  %v825 = vmax.f32 %v761, 0.0
  %v826 = vmax.f32 %v762, 0.0
  %v827 = vmax.f32 %v763, 0.0
  %v828 = vmax.f32 %v764, 0.0
  %v829 = vmax.f32 %v765, 0.0
  %v830 = vmax.f32 %v766, 0.0
  %v831 = vmax.f32 %v767, 0.0
  %v832 = vmax.f32 %v768, 0.0
  %v833 = vmax.f32 %v769, 0.0
  %v834 = vmax.f32 %v770, 0.0
  %v835 = vmax.f32 %v771, 0.0
  %v836 = vmax.f32 %v772, 0.0
  %v837 = vmax.f32 %v773, 0.0
  %v838 = vmax.f32 %v774, 0.0
  %v839 = vmax.f32 %v775, 0.0
  %v840 = vmax.f32 %v776, 0.0
  %v841 = vmax.f32 %v777, 0.0
  %v842 = vmax.f32 %v778, 0.0
  %v843 = vmax.f32 %v779, 0.0
  %v844 = vmax.f32 %v780, 0.0
  %v845 = vmax.f32 %v781, 0.0
  %v846 = vmax.f32 %v782, 0.0
  %v847 = vmax.f32 %v783, 0.0
  %v848 = vmax.f32 %v784, 0.0
  %v849 = vmax.f32 %v785, 0.0
  %v850 = vmax.f32 %v786, 0.0
  %v851 = vmax.f32 %v787, 0.0
  %v852 = vmax.f32 %v788, 0.0
  %v853 = vmax.f32 %v789, 0.0
  %v854 = vmax.f32 %v790, 0.0
  %v855 = vmax.f32 %v791, 0.0
  %v856 = vmax.f32 %v792, 0.0
  %v857 = vmax.f32 %v793, 0.0
  %v858 = vmax.f32 %v794, 0.0
  %v859 = vmax.f32 %v795, 0.0
  %v860 = vmax.f32 %v796, 0.0
  %v861 = vmax.f32 %v797, 0.0
  %v862 = vmax.f32 %v798, 0.0
  %v863 = vmax.f32 %v799, 0.0
  %v864 = vmax.f32 %v800, 0.0
  %v865 = vmax.f32 %v801, 0.0
  %v866 = vmax.f32 %v802, 0.0
  %v867 = vmax.f32 %v803, 0.0
  %v868 = vmax.f32 %v804, 0.0
  %v869 = vmax.f32 %v805, 0.0
  %vm870 = vcmask 195584
  %871 = vst.msk [vmem:[%s4] sm:$0xff] %vm870, %v806
  %872 = vst.msk [vmem:[%s4 + $0x8] sm:$0xff] %vm870, %v807
  %873 = vst.msk [vmem:[%s4 + $0x10] sm:$0xff] %vm870, %v808
  %874 = vst.msk [vmem:[%s4 + $0x18] sm:$0xff] %vm870, %v809
  %875 = vst.msk [vmem:[%s4 + $0x20] sm:$0xff] %vm870, %v810
  %876 = vst.msk [vmem:[%s4 + $0x28] sm:$0xff] %vm870, %v811
  %877 = vst.msk [vmem:[%s4 + $0x30] sm:$0xff] %vm870, %v812
  %878 = vst.msk [vmem:[%s4 + $0x38] sm:$0xff] %vm870, %v813
  %879 = vst.msk [vmem:[%s4 + $0x40] sm:$0xff] %vm870, %v814
  %880 = vst.msk [vmem:[%s4 + $0x48] sm:$0xff] %vm870, %v815
  %881 = vst.msk [vmem:[%s4 + $0x50] sm:$0xff] %vm870, %v816
  %882 = vst.msk [vmem:[%s4 + $0x58] sm:$0xff] %vm870, %v817
  %883 = vst.msk [vmem:[%s4 + $0x60] sm:$0xff] %vm870, %v818
  %884 = vst.msk [vmem:[%s4 + $0x68] sm:$0xff] %vm870, %v819
  %885 = vst.msk [vmem:[%s4 + $0x70] sm:$0xff] %vm870, %v820
  %886 = vst.msk [vmem:[%s4 + $0x78] sm:$0xff] %vm870, %v821
  %887 = vst.msk [vmem:[%s4 + $0x80] sm:$0xff] %vm870, %v822
  %888 = vst.msk [vmem:[%s4 + $0x88] sm:$0xff] %vm870, %v823
  %889 = vst.msk [vmem:[%s4 + $0x90] sm:$0xff] %vm870, %v824
  %890 = vst.msk [vmem:[%s4 + $0x98] sm:$0xff] %vm870, %v825
  %891 = vst.msk [vmem:[%s4 + $0xa0] sm:$0xff] %vm870, %v826
  %892 = vst.msk [vmem:[%s4 + $0xa8] sm:$0xff] %vm870, %v827
  %893 = vst.msk [vmem:[%s4 + $0xb0] sm:$0xff] %vm870, %v828
  %894 = vst.msk [vmem:[%s4 + $0xb8] sm:$0xff] %vm870, %v829
  %895 = vst.msk [vmem:[%s4 + $0xc0] sm:$0xff] %vm870, %v830
  %896 = vst.msk [vmem:[%s4 + $0xc8] sm:$0xff] %vm870, %v831
  %897 = vst.msk [vmem:[%s4 + $0xd0] sm:$0xff] %vm870, %v832
  %898 = vst.msk [vmem:[%s4 + $0xd8] sm:$0xff] %vm870, %v833
  %899 = vst.msk [vmem:[%s4 + $0xe0] sm:$0xff] %vm870, %v834
  %900 = vst.msk [vmem:[%s4 + $0xe8] sm:$0xff] %vm870, %v835
  %901 = vst.msk [vmem:[%s4 + $0xf0] sm:$0xff] %vm870, %v836
  %902 = vst.msk [vmem:[%s4 + $0xf8] sm:$0xff] %vm870, %v837
  %903 = vst.msk [vmem:[%s4 + $0x100] sm:$0xff] %vm870, %v838
  %904 = vst.msk [vmem:[%s4 + $0x108] sm:$0xff] %vm870, %v839
  %905 = vst.msk [vmem:[%s4 + $0x110] sm:$0xff] %vm870, %v840
  %906 = vst.msk [vmem:[%s4 + $0x118] sm:$0xff] %vm870, %v841
  %907 = vst.msk [vmem:[%s4 + $0x120] sm:$0xff] %vm870, %v842
  %908 = vst.msk [vmem:[%s4 + $0x128] sm:$0xff] %vm870, %v843
  %909 = vst.msk [vmem:[%s4 + $0x130] sm:$0xff] %vm870, %v844
  %910 = vst.msk [vmem:[%s4 + $0x138] sm:$0xff] %vm870, %v845
  %911 = vst.msk [vmem:[%s4 + $0x140] sm:$0xff] %vm870, %v846
  %912 = vst.msk [vmem:[%s4 + $0x148] sm:$0xff] %vm870, %v847
  %913 = vst.msk [vmem:[%s4 + $0x150] sm:$0xff] %vm870, %v848
  %914 = vst.msk [vmem:[%s4 + $0x158] sm:$0xff] %vm870, %v849
  %915 = vst.msk [vmem:[%s4 + $0x160] sm:$0xff] %vm870, %v850
  %916 = vst.msk [vmem:[%s4 + $0x168] sm:$0xff] %vm870, %v851
  %917 = vst.msk [vmem:[%s4 + $0x170] sm:$0xff] %vm870, %v852
  %918 = vst.msk [vmem:[%s4 + $0x178] sm:$0xff] %vm870, %v853
  %919 = vst.msk [vmem:[%s4 + $0x180] sm:$0xff] %vm870, %v854
  %920 = vst.msk [vmem:[%s4 + $0x188] sm:$0xff] %vm870, %v855
  %921 = vst.msk [vmem:[%s4 + $0x190] sm:$0xff] %vm870, %v856
  %922 = vst.msk [vmem:[%s4 + $0x198] sm:$0xff] %vm870, %v857
  %923 = vst.msk [vmem:[%s4 + $0x1a0] sm:$0xff] %vm870, %v858
  %924 = vst.msk [vmem:[%s4 + $0x1a8] sm:$0xff] %vm870, %v859
  %925 = vst.msk [vmem:[%s4 + $0x1b0] sm:$0xff] %vm870, %v860
  %926 = vst.msk [vmem:[%s4 + $0x1b8] sm:$0xff] %vm870, %v861
  %927 = vst.msk [vmem:[%s4 + $0x1c0] sm:$0xff] %vm870, %v862
  %928 = vst.msk [vmem:[%s4 + $0x1c8] sm:$0xff] %vm870, %v863
  %929 = vst.msk [vmem:[%s4 + $0x1d0] sm:$0xff] %vm870, %v864
  %930 = vst.msk [vmem:[%s4 + $0x1d8] sm:$0xff] %vm870, %v865
  %931 = vst.msk [vmem:[%s4 + $0x1e0] sm:$0xff] %vm870, %v866
  %932 = vst.msk [vmem:[%s4 + $0x1e8] sm:$0xff] %vm870, %v867
  %933 = vst.msk [vmem:[%s4 + $0x1f0] sm:$0xff] %vm870, %v868
  %934 = vst.msk [vmem:[%s4 + $0x1f8] sm:$0xff] %vm870, %v869
  // Predicated region
  $region18: #{a_call__.2} parent=0 // pred_check
    _
  $region19: #{a_call__.2} parent=0 // pred_check_branch
    %936 = sbr.rel (0) target = $region21
  $region20: #{a_call__.2} parent=0 // pred_region
    _
  $region21: #{a_call__.2} parent=0 // pred_fallthru
    _
  // Predicated region
  $region22: #{a_call__.2} parent=0 // pred_check
    _
  $region23: #{a_call__.2} parent=0 // pred_check_branch
    %938 = sbr.rel (0) target = $region25
  $region24: #{a_call__.2} parent=0 // pred_region
    _
  $region25: #{a_call__.2} parent=0 // pred_fallthru
    _

// kernel: a_call__.3
$region0: #{a_call__.3}
  #allocation0 [shape = 'u32[]', space=smem, size = 0x4, offset = 0x4, fixed_abs, tag = 'smem constant byte address 0x4 - core index']
  #allocation1 [shape = 'u32[144,128]{1,0:T(1,128)}', space=vmem, size = 0x12000, scoped, tag = 'internal scratch']
  %s0 = inlined_call_operand.vmem [shape: f32[2,18,18,24], index: 0, kind: input, shape index: {}]
  %s1 = inlined_call_operand.vmem [shape: f32[2,4,256], index: 1, kind: input, shape index: {}]
  %s2 = inlined_call_operand.vmem [shape: f32[9,24], index: 2, kind: input, shape index: {}]
  %s3 = inlined_call_operand.vmem [shape: f32[1,24], index: 3, kind: input, shape index: {}]
  %s4 = inlined_call_operand.vmem [shape: f32[1,24], index: 4, kind: input, shape index: {}]
  %s5 = inlined_call_operand.vmem [shape: f32[4,24], index: 5, kind: input, shape index: {}]
  %s6 = inlined_call_operand.vmem [shape: f32[4,1], index: 6, kind: input, shape index: {}]
  %s7 = inlined_call_operand.vmem [shape: f32[4,1], index: 7, kind: input, shape index: {}]
  %s8 = inlined_call_operand.vmem [shape: f32[2,4,256], index: 8, kind: output, shape index: {}]
  %s9 = sld [smem:[#allocation0]]
  $region65: #{a_call__.3} parent=0
    _
  %s11 = ssub.s32 1, %s9
  %s12 = scalar_select 0, %s11, %s9
  loop: start=0, step=1, limit=4
  $region2: #{a_call__.3} parent=0 // loop_pre_header
    _
  $region3: #{a_call__.3} parent=0 // loop_header
    %s14 = sphi 0, %s18
    %p15 = scmp.ge.s32.totalorder %s14, 4
    %s24 = sphi 0, %s26
    %s27 = sphi 0, %s24
    %s28 = sphi 0, %s27
    %s44 = sphi 0, %s28
    %s50 = sphi 0, %s52
    %s53 = sphi 0, %s50
    %s54 = sphi 0, %s53
    %s70 = sphi 0, %s54
    %s74 = sphi 0, %s74
    %s76 = sphi 0, %s74
    %s77 = sphi 0, %s76
    %s91 = sphi 0, %s77
    %s95 = sphi 0, %s95
    %s97 = sphi 0, %s95
    %s98 = sphi 0, %s97
    %s112 = sphi 0, %s98
    %s116 = sphi 0, %s116
    %s118 = sphi 0, %s116
    %s119 = sphi 0, %s118
    %s133 = sphi 0, %s119
    %s137 = sphi 0, %s137
    %s139 = sphi 0, %s137
    %s140 = sphi 0, %s139
    %s154 = sphi 0, %s140
    %s158 = sphi 0, %s158
    %s160 = sphi 0, %s158
    %s161 = sphi 0, %s160
    %s175 = sphi 0, %s161
    %s179 = sphi 0, %s179
    %s181 = sphi 0, %s179
    %s182 = sphi 0, %s181
    %s196 = sphi 0, %s182
    %s202 = sphi 0, %s204
    %s205 = sphi 0, %s202
    %s206 = sphi 0, %s205
    %s222 = sphi 0, %s206
  $region4: #{a_call__.3} parent=0 // loop_header_branch
    %17 = sbr.rel (%p15) target = $region8
  $region5: #{a_call__.3} parent=0 // loop_body
    %s19 = ssub.s32 %s14, 1
    %s20 = ssub.s32 %s14, 2
    %s21 = sadd.s32 %s14, 1
    %s22 = ssub.s32 %s14, %s21
    %p23 = scmp.eq.s32.totalorder %s22, 0
    %s25 = sadd.s32 %s24, 1
    %s26 = scalar_select %p23, %s24, %s25
    %p29 = pneg %p23
    %p30 = scmp.eq.s32.totalorder %s14, 1
    %p31 = por %p29, %p30
    %p32 = scmp.ne.s32.totalorder %s24, %s27
    %p33 = scmp.eq.s32.totalorder %s14, 0
    %p34 = por %p32, %p33
    %p35 = scmp.ne.s32.totalorder %s24, %s27
    %p36 = scmp.eq.s32.totalorder %s19, 1
    %p37 = por %p35, %p36
    %p38 = scmp.ne.s32.totalorder %s27, %s28
    %p39 = scmp.eq.s32.totalorder %s19, 0
    %p40 = por %p38, %p39
    %p41 = scmp.ne.s32.totalorder %s27, %s28
    %p42 = scmp.eq.s32.totalorder %s20, 1
    %p43 = por %p41, %p42
    %p45 = scmp.ne.s32.totalorder %s28, %s44
    %p46 = scmp.eq.s32.totalorder %s20, 0
    %p47 = por %p45, %p46
    %s48 = ssub.s32 %s14, %s21
    %p49 = scmp.eq.s32.totalorder %s48, 0
    %s51 = sadd.s32 %s50, 1
    %s52 = scalar_select %p49, %s50, %s51
    %p55 = pneg %p49
    %p56 = scmp.eq.s32.totalorder %s14, 1
    %p57 = por %p55, %p56
    %p58 = scmp.ne.s32.totalorder %s50, %s53
    %p59 = scmp.eq.s32.totalorder %s14, 0
    %p60 = por %p58, %p59
    %p61 = scmp.ne.s32.totalorder %s50, %s53
    %p62 = scmp.eq.s32.totalorder %s19, 1
    %p63 = por %p61, %p62
    %p64 = scmp.ne.s32.totalorder %s53, %s54
    %p65 = scmp.eq.s32.totalorder %s19, 0
    %p66 = por %p64, %p65
    %p67 = scmp.ne.s32.totalorder %s53, %s54
    %p68 = scmp.eq.s32.totalorder %s20, 1
    %p69 = por %p67, %p68
    %p71 = scmp.ne.s32.totalorder %s54, %s70
    %p72 = scmp.eq.s32.totalorder %s20, 0
    %p73 = por %p71, %p72
    %s75 = sadd.s32 %s74, 1
    %p78 = scmp.eq.s32.totalorder %s14, 1
    %p79 = scmp.ne.s32.totalorder %s74, %s76
    %p80 = scmp.eq.s32.totalorder %s14, 0
    %p81 = por %p79, %p80
    %p82 = scmp.ne.s32.totalorder %s74, %s76
    %p83 = scmp.eq.s32.totalorder %s19, 1
    %p84 = por %p82, %p83
    %p85 = scmp.ne.s32.totalorder %s76, %s77
    %p86 = scmp.eq.s32.totalorder %s19, 0
    %p87 = por %p85, %p86
    %p88 = scmp.ne.s32.totalorder %s76, %s77
    %p89 = scmp.eq.s32.totalorder %s20, 1
    %p90 = por %p88, %p89
    %p92 = scmp.ne.s32.totalorder %s77, %s91
    %p93 = scmp.eq.s32.totalorder %s20, 0
    %p94 = por %p92, %p93
    %s96 = sadd.s32 %s95, 1
    %p99 = scmp.eq.s32.totalorder %s14, 1
    %p100 = scmp.ne.s32.totalorder %s95, %s97
    %p101 = scmp.eq.s32.totalorder %s14, 0
    %p102 = por %p100, %p101
    %p103 = scmp.ne.s32.totalorder %s95, %s97
    %p104 = scmp.eq.s32.totalorder %s19, 1
    %p105 = por %p103, %p104
    %p106 = scmp.ne.s32.totalorder %s97, %s98
    %p107 = scmp.eq.s32.totalorder %s19, 0
    %p108 = por %p106, %p107
    %p109 = scmp.ne.s32.totalorder %s97, %s98
    %p110 = scmp.eq.s32.totalorder %s20, 1
    %p111 = por %p109, %p110
    %p113 = scmp.ne.s32.totalorder %s98, %s112
    %p114 = scmp.eq.s32.totalorder %s20, 0
    %p115 = por %p113, %p114
    %s117 = sadd.s32 %s116, 1
    %p120 = scmp.eq.s32.totalorder %s14, 1
    %p121 = scmp.ne.s32.totalorder %s116, %s118
    %p122 = scmp.eq.s32.totalorder %s14, 0
    %p123 = por %p121, %p122
    %p124 = scmp.ne.s32.totalorder %s116, %s118
    %p125 = scmp.eq.s32.totalorder %s19, 1
    %p126 = por %p124, %p125
    %p127 = scmp.ne.s32.totalorder %s118, %s119
    %p128 = scmp.eq.s32.totalorder %s19, 0
    %p129 = por %p127, %p128
    %p130 = scmp.ne.s32.totalorder %s118, %s119
    %p131 = scmp.eq.s32.totalorder %s20, 1
    %p132 = por %p130, %p131
    %p134 = scmp.ne.s32.totalorder %s119, %s133
    %p135 = scmp.eq.s32.totalorder %s20, 0
    %p136 = por %p134, %p135
    %s138 = sadd.s32 %s137, 1
    %p141 = scmp.eq.s32.totalorder %s14, 1
    %p142 = scmp.ne.s32.totalorder %s137, %s139
    %p143 = scmp.eq.s32.totalorder %s14, 0
    %p144 = por %p142, %p143
    %p145 = scmp.ne.s32.totalorder %s137, %s139
    %p146 = scmp.eq.s32.totalorder %s19, 1
    %p147 = por %p145, %p146
    %p148 = scmp.ne.s32.totalorder %s139, %s140
    %p149 = scmp.eq.s32.totalorder %s19, 0
    %p150 = por %p148, %p149
    %p151 = scmp.ne.s32.totalorder %s139, %s140
    %p152 = scmp.eq.s32.totalorder %s20, 1
    %p153 = por %p151, %p152
    %p155 = scmp.ne.s32.totalorder %s140, %s154
    %p156 = scmp.eq.s32.totalorder %s20, 0
    %p157 = por %p155, %p156
    %s159 = sadd.s32 %s158, 1
    %p162 = scmp.eq.s32.totalorder %s14, 1
    %p163 = scmp.ne.s32.totalorder %s158, %s160
    %p164 = scmp.eq.s32.totalorder %s14, 0
    %p165 = por %p163, %p164
    %p166 = scmp.ne.s32.totalorder %s158, %s160
    %p167 = scmp.eq.s32.totalorder %s19, 1
    %p168 = por %p166, %p167
    %p169 = scmp.ne.s32.totalorder %s160, %s161
    %p170 = scmp.eq.s32.totalorder %s19, 0
    %p171 = por %p169, %p170
    %p172 = scmp.ne.s32.totalorder %s160, %s161
    %p173 = scmp.eq.s32.totalorder %s20, 1
    %p174 = por %p172, %p173
    %p176 = scmp.ne.s32.totalorder %s161, %s175
    %p177 = scmp.eq.s32.totalorder %s20, 0
    %p178 = por %p176, %p177
    %s180 = sadd.s32 %s179, 1
    %p183 = scmp.eq.s32.totalorder %s14, 1
    %p184 = scmp.ne.s32.totalorder %s179, %s181
    %p185 = scmp.eq.s32.totalorder %s14, 0
    %p186 = por %p184, %p185
    %p187 = scmp.ne.s32.totalorder %s179, %s181
    %p188 = scmp.eq.s32.totalorder %s19, 1
    %p189 = por %p187, %p188
    %p190 = scmp.ne.s32.totalorder %s181, %s182
    %p191 = scmp.eq.s32.totalorder %s19, 0
    %p192 = por %p190, %p191
    %p193 = scmp.ne.s32.totalorder %s181, %s182
    %p194 = scmp.eq.s32.totalorder %s20, 1
    %p195 = por %p193, %p194
    %p197 = scmp.ne.s32.totalorder %s182, %s196
    %p198 = scmp.eq.s32.totalorder %s20, 0
    %p199 = por %p197, %p198
    %s200 = ssub.s32 %s14, %s21
    %p201 = scmp.eq.s32.totalorder %s200, 0
    %s203 = sadd.s32 %s202, 1
    %s204 = scalar_select %p201, %s202, %s203
    %p207 = pneg %p201
    %p208 = scmp.eq.s32.totalorder %s14, 1
    %p209 = por %p207, %p208
    %p210 = scmp.ne.s32.totalorder %s202, %s205
    %p211 = scmp.eq.s32.totalorder %s14, 0
    %p212 = por %p210, %p211
    %p213 = scmp.ne.s32.totalorder %s202, %s205
    %p214 = scmp.eq.s32.totalorder %s19, 1
    %p215 = por %p213, %p214
    %p216 = scmp.ne.s32.totalorder %s205, %s206
    %p217 = scmp.eq.s32.totalorder %s19, 0
    %p218 = por %p216, %p217
    %p219 = scmp.ne.s32.totalorder %s205, %s206
    %p220 = scmp.eq.s32.totalorder %s20, 1
    %p221 = por %p219, %p220
    %p223 = scmp.ne.s32.totalorder %s206, %s222
    %p224 = scmp.eq.s32.totalorder %s20, 0
    %p225 = por %p223, %p224
    %p226 = scmp.le.s32.totalorder 1, %s14
    %p227 = scmp.lt.s32.totalorder %s14, 3
    %p228 = pnand %p226, %p227
    %p229 = pneg %p228
    // Predicated region
    $region9: #{a_call__.3} parent=5 // pred_check
      _
    $region10: #{a_call__.3} parent=5 // pred_check_branch
      %231 = sbr.rel (%p228) target = $region12
    $region11: #{a_call__.3} parent=5 // pred_region
      %s232 = ssub.s32 %s14, 1
      // Predicated region
      $region13: #{a_call__.3} parent=11 // pred_check
        %p233 = pneg %p87
      $region14: #{a_call__.3} parent=11 // pred_check_branch
        %235 = sbr.rel (%p233) target = $region16
      $region15: #{a_call__.3} parent=11 // pred_region
        _
      $region16: #{a_call__.3} parent=11 // pred_fallthru
        _
      // Predicated region
      $region17: #{a_call__.3} parent=11 // pred_check
        %p236 = pneg %p108
      $region18: #{a_call__.3} parent=11 // pred_check_branch
        %238 = sbr.rel (%p236) target = $region20
      $region19: #{a_call__.3} parent=11 // pred_region
        _
      $region20: #{a_call__.3} parent=11 // pred_fallthru
        _
      // Predicated region
      $region21: #{a_call__.3} parent=11 // pred_check
        %p239 = pneg %p129
      $region22: #{a_call__.3} parent=11 // pred_check_branch
        %241 = sbr.rel (%p239) target = $region24
      $region23: #{a_call__.3} parent=11 // pred_region
        _
      $region24: #{a_call__.3} parent=11 // pred_fallthru
        _
      // Predicated region
      $region25: #{a_call__.3} parent=11 // pred_check
        %p242 = pneg %p150
      $region26: #{a_call__.3} parent=11 // pred_check_branch
        %244 = sbr.rel (%p242) target = $region28
      $region27: #{a_call__.3} parent=11 // pred_region
        _
      $region28: #{a_call__.3} parent=11 // pred_fallthru
        _
      // Predicated region
      $region29: #{a_call__.3} parent=11 // pred_check
        %p245 = pneg %p171
      $region30: #{a_call__.3} parent=11 // pred_check_branch
        %247 = sbr.rel (%p245) target = $region32
      $region31: #{a_call__.3} parent=11 // pred_region
        _
      $region32: #{a_call__.3} parent=11 // pred_fallthru
        _
      // Predicated region
      $region33: #{a_call__.3} parent=11 // pred_check
        %p248 = pneg %p192
      $region34: #{a_call__.3} parent=11 // pred_check_branch
        %250 = sbr.rel (%p248) target = $region36
      $region35: #{a_call__.3} parent=11 // pred_region
        _
      $region36: #{a_call__.3} parent=11 // pred_fallthru
        _
    $region12: #{a_call__.3} parent=5 // pred_fallthru
      _
    %p251 = scmp.lt.s32.totalorder %s14, 2
    // Predicated region
    $region37: #{a_call__.3} parent=5 // pred_check
      %p252 = pneg %p251
    $region38: #{a_call__.3} parent=5 // pred_check_branch
      %254 = sbr.rel (%p252) target = $region40
    $region39: #{a_call__.3} parent=5 // pred_region
      // Predicated region
      $region41: #{a_call__.3} parent=39 // pred_check
        %p255 = pneg %p34
      $region42: #{a_call__.3} parent=39 // pred_check_branch
        %257 = sbr.rel (%p255) target = $region44
      $region43: #{a_call__.3} parent=39 // pred_region
        %p258 = scmp.lt.s32.totalorder %s14, 1
        %s259 = scalar_select %p258, %s14, 1
        %s260 = smul.addr %s259, 54
        %s261 = smul.addr %s260, 8
        %s262 = scalar_lea.vmem %s0, %s261
      $region44: #{a_call__.3} parent=39 // pred_fallthru
        _
      // Predicated region
      $region45: #{a_call__.3} parent=39 // pred_check
        %p263 = pneg %p60
      $region46: #{a_call__.3} parent=39 // pred_check_branch
        %265 = sbr.rel (%p263) target = $region48
      $region47: #{a_call__.3} parent=39 // pred_region
        %p266 = scmp.lt.s32.totalorder %s14, 1
        %s267 = scalar_select %p266, %s14, 1
        %s268 = smul.addr %s267, 2
        %s269 = smul.addr %s268, 4
        %s270 = scalar_lea.vmem %s1, %s269
      $region48: #{a_call__.3} parent=39 // pred_fallthru
        _
    $region40: #{a_call__.3} parent=5 // pred_fallthru
      _
    %p271 = scmp.le.s32.totalorder 1, %s14
    %p272 = scmp.lt.s32.totalorder %s14, 3
    %p273 = pnand %p271, %p272
    %p274 = pneg %p273
    // Predicated region
    $region49: #{a_call__.3} parent=5 // pred_check
      _
    $region50: #{a_call__.3} parent=5 // pred_check_branch
      %276 = sbr.rel (%p273) target = $region52
    $region51: #{a_call__.3} parent=5 // pred_region
      %s277 = ssub.s32 %s14, 1
      %p278 = scmp.lt.s32.totalorder %s19, 1
      %s279 = scalar_select %p278, %s19, 1
      %s280 = smul.addr %s279, 54
      %s281 = smul.addr %s280, 8
      %s282 = scalar_lea.vmem %s0, %s281
      %p283 = pneg %p40
      %p284 = pneg %p37
      %p285 = scmp.lt.s32.totalorder %s19, 1
      %s286 = scalar_select %p285, %s19, 1
      %s287 = smul.addr %s286, 2
      %s288 = smul.addr %s287, 4
      %s289 = scalar_lea.vmem %s1, %s288
      %p290 = pneg %p66
      %p291 = pneg %p63
      %p292 = pneg %p87
      %p293 = pneg %p84
      %p294 = pneg %p108
      %p295 = pneg %p105
      %p296 = pneg %p129
      %p297 = pneg %p126
      %p298 = pneg %p150
      %p299 = pneg %p147
      %p300 = pneg %p171
      %p301 = pneg %p168
      %p302 = pneg %p192
      %p303 = pneg %p189
      %p304 = pneg %p218
      %p305 = pneg %p215
      %p306 = scmp.lt.s32.totalorder %s19, 1
      %s307 = scalar_select %p306, %s19, 1
      %s308 = smul.addr %s307, 2
      %s309 = smul.addr %s308, 4
      %s310 = scalar_lea.vmem %s8, %s309
      %p311 = scmp.lt.s32.totalorder %s19, 1
      %s312 = scalar_select %p311, %s19, 1
      %s313 = smul.addr %s312, 54
      %s314 = smul.addr %s313, 8
      %s315 = scalar_lea.vmem %s0, %s314
      %p316 = scmp.lt.s32.totalorder %s19, 1
      %s317 = scalar_select %p316, %s19, 1
      %s318 = smul.addr %s317, 2
      %s319 = smul.addr %s318, 4
      %s320 = scalar_lea.vmem %s1, %s319
      %p321 = scmp.lt.s32.totalorder %s19, 1
      %s322 = scalar_select %p321, %s19, 1
      %s323 = smul.addr %s322, 2
      %s324 = smul.addr %s323, 4
      %s325 = scalar_lea.vmem %s8, %s324
      %v326 = vld [vmem:[%s315] sm:$0xff]
      %v327 = vld [vmem:[%s315 + $0x8] sm:$0xff]
      %v328 = vld [vmem:[%s315 + $0x18] sm:$0xff]
      %v329 = vld [vmem:[%s315 + $0x20] sm:$0xff]
      %v330 = vld [vmem:[%s315 + $0x30] sm:$0xff]
      %v331 = vld [vmem:[%s315 + $0x38] sm:$0xff]
      %v332 = vld [vmem:[%s315 + $0x48] sm:$0xff]
      %v333 = vld [vmem:[%s315 + $0x50] sm:$0xff]
      %v334 = vld [vmem:[%s315 + $0x60] sm:$0xff]
      %v335 = vld [vmem:[%s315 + $0x68] sm:$0xff]
      %v336 = vld [vmem:[%s315 + $0x78] sm:$0xff]
      %v337 = vld [vmem:[%s315 + $0x80] sm:$0xff]
      %v338 = vld [vmem:[%s315 + $0x90] sm:$0xff]
      %v339 = vld [vmem:[%s315 + $0x98] sm:$0xff]
      %v340 = vld [vmem:[%s315 + $0xa8] sm:$0xff]
      %v341 = vld [vmem:[%s315 + $0xb0] sm:$0xff]
      %v342 = vld [vmem:[%s315 + $0xc0] sm:$0xff]
      %v343 = vld [vmem:[%s315 + $0xc8] sm:$0xff]
      %v344 = vld [vmem:[%s315 + $0xd8] sm:$0xff]
      %v345 = vld [vmem:[%s315 + $0xe0] sm:$0xff]
      %v346 = vld [vmem:[%s315 + $0xf0] sm:$0xff]
      %v347 = vld [vmem:[%s315 + $0xf8] sm:$0xff]
      %v348 = vld [vmem:[%s315 + $0x108] sm:$0xff]
      %v349 = vld [vmem:[%s315 + $0x110] sm:$0xff]
      %v350 = vld [vmem:[%s315 + $0x120] sm:$0xff]
      %v351 = vld [vmem:[%s315 + $0x128] sm:$0xff]
      %v352 = vld [vmem:[%s315 + $0x138] sm:$0xff]
      %v353 = vld [vmem:[%s315 + $0x140] sm:$0xff]
      %v354 = vld [vmem:[%s315 + $0x150] sm:$0xff]
      %v355 = vld [vmem:[%s315 + $0x158] sm:$0xff]
      %v356 = vld [vmem:[%s315 + $0x168] sm:$0xff]
      %v357 = vld [vmem:[%s315 + $0x170] sm:$0xff]
      %v358 = vld [vmem:[%s2] sm:$0x1]
      %v359 = vlaneseq
      %v360 = vshrl.u32 %v359, 7
      %v361 = vsub.s32 0, %v360
      %v362 = vrot.slane %v358, %v361
      %v363 = vmul.f32 %v326, %v362
      %v364 = vmul.f32 %v327, %v362
      %v365 = vmul.f32 %v328, %v362
      %v366 = vmul.f32 %v329, %v362
      %v367 = vmul.f32 %v330, %v362
      %v368 = vmul.f32 %v331, %v362
      %v369 = vmul.f32 %v332, %v362
      %v370 = vmul.f32 %v333, %v362
      %v371 = vmul.f32 %v334, %v362
      %v372 = vmul.f32 %v335, %v362
      %v373 = vmul.f32 %v336, %v362
      %v374 = vmul.f32 %v337, %v362
      %v375 = vmul.f32 %v338, %v362
      %v376 = vmul.f32 %v339, %v362
      %v377 = vmul.f32 %v340, %v362
      %v378 = vmul.f32 %v341, %v362
      %v379 = vmul.f32 %v342, %v362
      %v380 = vmul.f32 %v343, %v362
      %v381 = vmul.f32 %v344, %v362
      %v382 = vmul.f32 %v345, %v362
      %v383 = vmul.f32 %v346, %v362
      %v384 = vmul.f32 %v347, %v362
      %v385 = vmul.f32 %v348, %v362
      %v386 = vmul.f32 %v349, %v362
      %v387 = vmul.f32 %v350, %v362
      %v388 = vmul.f32 %v351, %v362
      %v389 = vmul.f32 %v352, %v362
      %v390 = vmul.f32 %v353, %v362
      %v391 = vmul.f32 %v354, %v362
      %v392 = vmul.f32 %v355, %v362
      %v393 = vmul.f32 %v356, %v362
      %v394 = vmul.f32 %v357, %v362
      %v395 = vld [vmem:[%s315 + $0x1] sm:$0xff]
      %v396 = vld [vmem:[%s315 + $0x9] sm:$0xff]
      %v397 = vld [vmem:[%s315 + $0x19] sm:$0xff]
      %v398 = vld [vmem:[%s315 + $0x21] sm:$0xff]
      %v399 = vld [vmem:[%s315 + $0x31] sm:$0xff]
      %v400 = vld [vmem:[%s315 + $0x39] sm:$0xff]
      %v401 = vld [vmem:[%s315 + $0x49] sm:$0xff]
      %v402 = vld [vmem:[%s315 + $0x51] sm:$0xff]
      %v403 = vld [vmem:[%s315 + $0x61] sm:$0xff]
      %v404 = vld [vmem:[%s315 + $0x69] sm:$0xff]
      %v405 = vld [vmem:[%s315 + $0x79] sm:$0xff]
      %v406 = vld [vmem:[%s315 + $0x81] sm:$0xff]
      %v407 = vld [vmem:[%s315 + $0x91] sm:$0xff]
      %v408 = vld [vmem:[%s315 + $0x99] sm:$0xff]
      %v409 = vld [vmem:[%s315 + $0xa9] sm:$0xff]
      %v410 = vld [vmem:[%s315 + $0xb1] sm:$0xff]
      %v411 = vld [vmem:[%s315 + $0xc1] sm:$0xff]
      %v412 = vld [vmem:[%s315 + $0xc9] sm:$0xff]
      %v413 = vld [vmem:[%s315 + $0xd9] sm:$0xff]
      %v414 = vld [vmem:[%s315 + $0xe1] sm:$0xff]
      %v415 = vld [vmem:[%s315 + $0xf1] sm:$0xff]
      %v416 = vld [vmem:[%s315 + $0xf9] sm:$0xff]
      %v417 = vld [vmem:[%s315 + $0x109] sm:$0xff]
      %v418 = vld [vmem:[%s315 + $0x111] sm:$0xff]
      %v419 = vld [vmem:[%s315 + $0x121] sm:$0xff]
      %v420 = vld [vmem:[%s315 + $0x129] sm:$0xff]
      %v421 = vld [vmem:[%s315 + $0x139] sm:$0xff]
      %v422 = vld [vmem:[%s315 + $0x141] sm:$0xff]
      %v423 = vld [vmem:[%s315 + $0x151] sm:$0xff]
      %v424 = vld [vmem:[%s315 + $0x159] sm:$0xff]
      %v425 = vld [vmem:[%s315 + $0x169] sm:$0xff]
      %v426 = vld [vmem:[%s315 + $0x171] sm:$0xff]
      %v427 = vld [vmem:[%s2 + $0x1] sm:$0x1]
      %v428 = vlaneseq
      %v429 = vshrl.u32 %v428, 7
      %v430 = vsub.s32 0, %v429
      %v431 = vrot.slane %v427, %v430
      %v432 = vmul.f32 %v395, %v431
      %v433 = vmul.f32 %v396, %v431
      %v434 = vmul.f32 %v397, %v431
      %v435 = vmul.f32 %v398, %v431
      %v436 = vmul.f32 %v399, %v431
      %v437 = vmul.f32 %v400, %v431
      %v438 = vmul.f32 %v401, %v431
      %v439 = vmul.f32 %v402, %v431
      %v440 = vmul.f32 %v403, %v431
      %v441 = vmul.f32 %v404, %v431
      %v442 = vmul.f32 %v405, %v431
      %v443 = vmul.f32 %v406, %v431
      %v444 = vmul.f32 %v407, %v431
      %v445 = vmul.f32 %v408, %v431
      %v446 = vmul.f32 %v409, %v431
      %v447 = vmul.f32 %v410, %v431
      %v448 = vmul.f32 %v411, %v431
      %v449 = vmul.f32 %v412, %v431
      %v450 = vmul.f32 %v413, %v431
      %v451 = vmul.f32 %v414, %v431
      %v452 = vmul.f32 %v415, %v431
      %v453 = vmul.f32 %v416, %v431
      %v454 = vmul.f32 %v417, %v431
      %v455 = vmul.f32 %v418, %v431
      %v456 = vmul.f32 %v419, %v431
      %v457 = vmul.f32 %v420, %v431
      %v458 = vmul.f32 %v421, %v431
      %v459 = vmul.f32 %v422, %v431
      %v460 = vmul.f32 %v423, %v431
      %v461 = vmul.f32 %v424, %v431
      %v462 = vmul.f32 %v425, %v431
      %v463 = vmul.f32 %v426, %v431
      %v464 = vadd.f32 %v363, %v432
      %v465 = vadd.f32 %v364, %v433
      %v466 = vadd.f32 %v365, %v434
      %v467 = vadd.f32 %v366, %v435
      %v468 = vadd.f32 %v367, %v436
      %v469 = vadd.f32 %v368, %v437
      %v470 = vadd.f32 %v369, %v438
      %v471 = vadd.f32 %v370, %v439
      %v472 = vadd.f32 %v371, %v440
      %v473 = vadd.f32 %v372, %v441
      %v474 = vadd.f32 %v373, %v442
      %v475 = vadd.f32 %v374, %v443
      %v476 = vadd.f32 %v375, %v444
      %v477 = vadd.f32 %v376, %v445
      %v478 = vadd.f32 %v377, %v446
      %v479 = vadd.f32 %v378, %v447
      %v480 = vadd.f32 %v379, %v448
      %v481 = vadd.f32 %v380, %v449
      %v482 = vadd.f32 %v381, %v450
      %v483 = vadd.f32 %v382, %v451
      %v484 = vadd.f32 %v383, %v452
      %v485 = vadd.f32 %v384, %v453
      %v486 = vadd.f32 %v385, %v454
      %v487 = vadd.f32 %v386, %v455
      %v488 = vadd.f32 %v387, %v456
      %v489 = vadd.f32 %v388, %v457
      %v490 = vadd.f32 %v389, %v458
      %v491 = vadd.f32 %v390, %v459
      %v492 = vadd.f32 %v391, %v460
      %v493 = vadd.f32 %v392, %v461
      %v494 = vadd.f32 %v393, %v462
      %v495 = vadd.f32 %v394, %v463
      %v496 = vld [vmem:[%s315 + $0x2] sm:$0xff]
      %v497 = vld [vmem:[%s315 + $0xa] sm:$0xff]
      %v498 = vld [vmem:[%s315 + $0x1a] sm:$0xff]
      %v499 = vld [vmem:[%s315 + $0x22] sm:$0xff]
      %v500 = vld [vmem:[%s315 + $0x32] sm:$0xff]
      %v501 = vld [vmem:[%s315 + $0x3a] sm:$0xff]
      %v502 = vld [vmem:[%s315 + $0x4a] sm:$0xff]
      %v503 = vld [vmem:[%s315 + $0x52] sm:$0xff]
      %v504 = vld [vmem:[%s315 + $0x62] sm:$0xff]
      %v505 = vld [vmem:[%s315 + $0x6a] sm:$0xff]
      %v506 = vld [vmem:[%s315 + $0x7a] sm:$0xff]
      %v507 = vld [vmem:[%s315 + $0x82] sm:$0xff]
      %v508 = vld [vmem:[%s315 + $0x92] sm:$0xff]
      %v509 = vld [vmem:[%s315 + $0x9a] sm:$0xff]
      %v510 = vld [vmem:[%s315 + $0xaa] sm:$0xff]
      %v511 = vld [vmem:[%s315 + $0xb2] sm:$0xff]
      %v512 = vld [vmem:[%s315 + $0xc2] sm:$0xff]
      %v513 = vld [vmem:[%s315 + $0xca] sm:$0xff]
      %v514 = vld [vmem:[%s315 + $0xda] sm:$0xff]
      %v515 = vld [vmem:[%s315 + $0xe2] sm:$0xff]
      %v516 = vld [vmem:[%s315 + $0xf2] sm:$0xff]
      %v517 = vld [vmem:[%s315 + $0xfa] sm:$0xff]
      %v518 = vld [vmem:[%s315 + $0x10a] sm:$0xff]
      %v519 = vld [vmem:[%s315 + $0x112] sm:$0xff]
      %v520 = vld [vmem:[%s315 + $0x122] sm:$0xff]
      %v521 = vld [vmem:[%s315 + $0x12a] sm:$0xff]
      %v522 = vld [vmem:[%s315 + $0x13a] sm:$0xff]
      %v523 = vld [vmem:[%s315 + $0x142] sm:$0xff]
      %v524 = vld [vmem:[%s315 + $0x152] sm:$0xff]
      %v525 = vld [vmem:[%s315 + $0x15a] sm:$0xff]
      %v526 = vld [vmem:[%s315 + $0x16a] sm:$0xff]
      %v527 = vld [vmem:[%s315 + $0x172] sm:$0xff]
      %v528 = vld [vmem:[%s2 + $0x2] sm:$0x1]
      %v529 = vlaneseq
      %v530 = vshrl.u32 %v529, 7
      %v531 = vsub.s32 0, %v530
      %v532 = vrot.slane %v528, %v531
      %v533 = vmul.f32 %v496, %v532
      %v534 = vmul.f32 %v497, %v532
      %v535 = vmul.f32 %v498, %v532
      %v536 = vmul.f32 %v499, %v532
      %v537 = vmul.f32 %v500, %v532
      %v538 = vmul.f32 %v501, %v532
      %v539 = vmul.f32 %v502, %v532
      %v540 = vmul.f32 %v503, %v532
      %v541 = vmul.f32 %v504, %v532
      %v542 = vmul.f32 %v505, %v532
      %v543 = vmul.f32 %v506, %v532
      %v544 = vmul.f32 %v507, %v532
      %v545 = vmul.f32 %v508, %v532
      %v546 = vmul.f32 %v509, %v532
      %v547 = vmul.f32 %v510, %v532
      %v548 = vmul.f32 %v511, %v532
      %v549 = vmul.f32 %v512, %v532
      %v550 = vmul.f32 %v513, %v532
      %v551 = vmul.f32 %v514, %v532
      %v552 = vmul.f32 %v515, %v532
      %v553 = vmul.f32 %v516, %v532
      %v554 = vmul.f32 %v517, %v532
      %v555 = vmul.f32 %v518, %v532
      %v556 = vmul.f32 %v519, %v532
      %v557 = vmul.f32 %v520, %v532
      %v558 = vmul.f32 %v521, %v532
      %v559 = vmul.f32 %v522, %v532
      %v560 = vmul.f32 %v523, %v532
      %v561 = vmul.f32 %v524, %v532
      %v562 = vmul.f32 %v525, %v532
      %v563 = vmul.f32 %v526, %v532
      %v564 = vmul.f32 %v527, %v532
      %v565 = vadd.f32 %v464, %v533
      %v566 = vadd.f32 %v465, %v534
      %v567 = vadd.f32 %v466, %v535
      %v568 = vadd.f32 %v467, %v536
      %v569 = vadd.f32 %v468, %v537
      %v570 = vadd.f32 %v469, %v538
      %v571 = vadd.f32 %v470, %v539
      %v572 = vadd.f32 %v471, %v540
      %v573 = vadd.f32 %v472, %v541
      %v574 = vadd.f32 %v473, %v542
      %v575 = vadd.f32 %v474, %v543
      %v576 = vadd.f32 %v475, %v544
      %v577 = vadd.f32 %v476, %v545
      %v578 = vadd.f32 %v477, %v546
      %v579 = vadd.f32 %v478, %v547
      %v580 = vadd.f32 %v479, %v548
      %v581 = vadd.f32 %v480, %v549
      %v582 = vadd.f32 %v481, %v550
      %v583 = vadd.f32 %v482, %v551
      %v584 = vadd.f32 %v483, %v552
      %v585 = vadd.f32 %v484, %v553
      %v586 = vadd.f32 %v485, %v554
      %v587 = vadd.f32 %v486, %v555
      %v588 = vadd.f32 %v487, %v556
      %v589 = vadd.f32 %v488, %v557
      %v590 = vadd.f32 %v489, %v558
      %v591 = vadd.f32 %v490, %v559
      %v592 = vadd.f32 %v491, %v560
      %v593 = vadd.f32 %v492, %v561
      %v594 = vadd.f32 %v493, %v562
      %v595 = vadd.f32 %v494, %v563
      %v596 = vadd.f32 %v495, %v564
      %s597 = scalar_lea.vmem %s315, 24
      %v598 = vld [vmem:[%s597] sm:$0xff]
      %v599 = vld [vmem:[%s597 + $0x8] sm:$0xff]
      %v600 = vld [vmem:[%s597 + $0x18] sm:$0xff]
      %v601 = vld [vmem:[%s597 + $0x20] sm:$0xff]
      %v602 = vld [vmem:[%s597 + $0x30] sm:$0xff]
      %v603 = vld [vmem:[%s597 + $0x38] sm:$0xff]
      %v604 = vld [vmem:[%s597 + $0x48] sm:$0xff]
      %v605 = vld [vmem:[%s597 + $0x50] sm:$0xff]
      %v606 = vld [vmem:[%s597 + $0x60] sm:$0xff]
      %v607 = vld [vmem:[%s597 + $0x68] sm:$0xff]
      %v608 = vld [vmem:[%s597 + $0x78] sm:$0xff]
      %v609 = vld [vmem:[%s597 + $0x80] sm:$0xff]
      %v610 = vld [vmem:[%s597 + $0x90] sm:$0xff]
      %v611 = vld [vmem:[%s597 + $0x98] sm:$0xff]
      %v612 = vld [vmem:[%s597 + $0xa8] sm:$0xff]
      %v613 = vld [vmem:[%s597 + $0xb0] sm:$0xff]
      %v614 = vld [vmem:[%s597 + $0xc0] sm:$0xff]
      %v615 = vld [vmem:[%s597 + $0xc8] sm:$0xff]
      %v616 = vld [vmem:[%s597 + $0xd8] sm:$0xff]
      %v617 = vld [vmem:[%s597 + $0xe0] sm:$0xff]
      %v618 = vld [vmem:[%s597 + $0xf0] sm:$0xff]
      %v619 = vld [vmem:[%s597 + $0xf8] sm:$0xff]
      %v620 = vld [vmem:[%s597 + $0x108] sm:$0xff]
      %v621 = vld [vmem:[%s597 + $0x110] sm:$0xff]
      %v622 = vld [vmem:[%s597 + $0x120] sm:$0xff]
      %v623 = vld [vmem:[%s597 + $0x128] sm:$0xff]
      %v624 = vld [vmem:[%s597 + $0x138] sm:$0xff]
      %v625 = vld [vmem:[%s597 + $0x140] sm:$0xff]
      %v626 = vld [vmem:[%s597 + $0x150] sm:$0xff]
      %v627 = vld [vmem:[%s597 + $0x158] sm:$0xff]
      %v628 = vld [vmem:[%s597 + $0x168] sm:$0xff]
      %v629 = vld [vmem:[%s597 + $0x170] sm:$0xff]
      %v630 = vld [vmem:[%s2 + $0x3] sm:$0x1]
      %v631 = vlaneseq
      %v632 = vshrl.u32 %v631, 7
      %v633 = vsub.s32 0, %v632
      %v634 = vrot.slane %v630, %v633
      %v635 = vmul.f32 %v598, %v634
      %v636 = vmul.f32 %v599, %v634
      %v637 = vmul.f32 %v600, %v634
      %v638 = vmul.f32 %v601, %v634
      %v639 = vmul.f32 %v602, %v634
      %v640 = vmul.f32 %v603, %v634
      %v641 = vmul.f32 %v604, %v634
      %v642 = vmul.f32 %v605, %v634
      %v643 = vmul.f32 %v606, %v634
      %v644 = vmul.f32 %v607, %v634
      %v645 = vmul.f32 %v608, %v634
      %v646 = vmul.f32 %v609, %v634
      %v647 = vmul.f32 %v610, %v634
      %v648 = vmul.f32 %v611, %v634
      %v649 = vmul.f32 %v612, %v634
      %v650 = vmul.f32 %v613, %v634
      %v651 = vmul.f32 %v614, %v634
      %v652 = vmul.f32 %v615, %v634
      %v653 = vmul.f32 %v616, %v634
      %v654 = vmul.f32 %v617, %v634
      %v655 = vmul.f32 %v618, %v634
      %v656 = vmul.f32 %v619, %v634
      %v657 = vmul.f32 %v620, %v634
      %v658 = vmul.f32 %v621, %v634
      %v659 = vmul.f32 %v622, %v634
      %v660 = vmul.f32 %v623, %v634
      %v661 = vmul.f32 %v624, %v634
      %v662 = vmul.f32 %v625, %v634
      %v663 = vmul.f32 %v626, %v634
      %v664 = vmul.f32 %v627, %v634
      %v665 = vmul.f32 %v628, %v634
      %v666 = vmul.f32 %v629, %v634
      %v667 = vadd.f32 %v565, %v635
      %v668 = vadd.f32 %v566, %v636
      %v669 = vadd.f32 %v567, %v637
      %v670 = vadd.f32 %v568, %v638
      %v671 = vadd.f32 %v569, %v639
      %v672 = vadd.f32 %v570, %v640
      %v673 = vadd.f32 %v571, %v641
      %v674 = vadd.f32 %v572, %v642
      %v675 = vadd.f32 %v573, %v643
      %v676 = vadd.f32 %v574, %v644
      %v677 = vadd.f32 %v575, %v645
      %v678 = vadd.f32 %v576, %v646
      %v679 = vadd.f32 %v577, %v647
      %v680 = vadd.f32 %v578, %v648
      %v681 = vadd.f32 %v579, %v649
      %v682 = vadd.f32 %v580, %v650
      %v683 = vadd.f32 %v581, %v651
      %v684 = vadd.f32 %v582, %v652
      %v685 = vadd.f32 %v583, %v653
      %v686 = vadd.f32 %v584, %v654
      %v687 = vadd.f32 %v585, %v655
      %v688 = vadd.f32 %v586, %v656
      %v689 = vadd.f32 %v587, %v657
      %v690 = vadd.f32 %v588, %v658
      %v691 = vadd.f32 %v589, %v659
      %v692 = vadd.f32 %v590, %v660
      %v693 = vadd.f32 %v591, %v661
      %v694 = vadd.f32 %v592, %v662
      %v695 = vadd.f32 %v593, %v663
      %v696 = vadd.f32 %v594, %v664
      %v697 = vadd.f32 %v595, %v665
      %v698 = vadd.f32 %v596, %v666
      %v699 = vld [vmem:[%s597 + $0x1] sm:$0xff]
      %v700 = vld [vmem:[%s597 + $0x9] sm:$0xff]
      %v701 = vld [vmem:[%s597 + $0x19] sm:$0xff]
      %v702 = vld [vmem:[%s597 + $0x21] sm:$0xff]
      %v703 = vld [vmem:[%s597 + $0x31] sm:$0xff]
      %v704 = vld [vmem:[%s597 + $0x39] sm:$0xff]
      %v705 = vld [vmem:[%s597 + $0x49] sm:$0xff]
      %v706 = vld [vmem:[%s597 + $0x51] sm:$0xff]
      %v707 = vld [vmem:[%s597 + $0x61] sm:$0xff]
      %v708 = vld [vmem:[%s597 + $0x69] sm:$0xff]
      %v709 = vld [vmem:[%s597 + $0x79] sm:$0xff]
      %v710 = vld [vmem:[%s597 + $0x81] sm:$0xff]
      %v711 = vld [vmem:[%s597 + $0x91] sm:$0xff]
      %v712 = vld [vmem:[%s597 + $0x99] sm:$0xff]
      %v713 = vld [vmem:[%s597 + $0xa9] sm:$0xff]
      %v714 = vld [vmem:[%s597 + $0xb1] sm:$0xff]
      %v715 = vld [vmem:[%s597 + $0xc1] sm:$0xff]
      %v716 = vld [vmem:[%s597 + $0xc9] sm:$0xff]
      %v717 = vld [vmem:[%s597 + $0xd9] sm:$0xff]
      %v718 = vld [vmem:[%s597 + $0xe1] sm:$0xff]
      %v719 = vld [vmem:[%s597 + $0xf1] sm:$0xff]
      %v720 = vld [vmem:[%s597 + $0xf9] sm:$0xff]
      %v721 = vld [vmem:[%s597 + $0x109] sm:$0xff]
      %v722 = vld [vmem:[%s597 + $0x111] sm:$0xff]
      %v723 = vld [vmem:[%s597 + $0x121] sm:$0xff]
      %v724 = vld [vmem:[%s597 + $0x129] sm:$0xff]
      %v725 = vld [vmem:[%s597 + $0x139] sm:$0xff]
      %v726 = vld [vmem:[%s597 + $0x141] sm:$0xff]
      %v727 = vld [vmem:[%s597 + $0x151] sm:$0xff]
      %v728 = vld [vmem:[%s597 + $0x159] sm:$0xff]
      %v729 = vld [vmem:[%s597 + $0x169] sm:$0xff]
      %v730 = vld [vmem:[%s597 + $0x171] sm:$0xff]
      %v731 = vld [vmem:[%s2 + $0x4] sm:$0x1]
      %v732 = vlaneseq
      %v733 = vshrl.u32 %v732, 7
      %v734 = vsub.s32 0, %v733
      %v735 = vrot.slane %v731, %v734
      %v736 = vmul.f32 %v699, %v735
      %v737 = vmul.f32 %v700, %v735
      %v738 = vmul.f32 %v701, %v735
      %v739 = vmul.f32 %v702, %v735
      %v740 = vmul.f32 %v703, %v735
      %v741 = vmul.f32 %v704, %v735
      %v742 = vmul.f32 %v705, %v735
      %v743 = vmul.f32 %v706, %v735
      %v744 = vmul.f32 %v707, %v735
      %v745 = vmul.f32 %v708, %v735
      %v746 = vmul.f32 %v709, %v735
      %v747 = vmul.f32 %v710, %v735
      %v748 = vmul.f32 %v711, %v735
      %v749 = vmul.f32 %v712, %v735
      %v750 = vmul.f32 %v713, %v735
      %v751 = vmul.f32 %v714, %v735
      %v752 = vmul.f32 %v715, %v735
      %v753 = vmul.f32 %v716, %v735
      %v754 = vmul.f32 %v717, %v735
      %v755 = vmul.f32 %v718, %v735
      %v756 = vmul.f32 %v719, %v735
      %v757 = vmul.f32 %v720, %v735
      %v758 = vmul.f32 %v721, %v735
      %v759 = vmul.f32 %v722, %v735
      %v760 = vmul.f32 %v723, %v735
      %v761 = vmul.f32 %v724, %v735
      %v762 = vmul.f32 %v725, %v735
      %v763 = vmul.f32 %v726, %v735
      %v764 = vmul.f32 %v727, %v735
      %v765 = vmul.f32 %v728, %v735
      %v766 = vmul.f32 %v729, %v735
      %v767 = vmul.f32 %v730, %v735
      %v768 = vadd.f32 %v667, %v736
      %v769 = vadd.f32 %v668, %v737
      %v770 = vadd.f32 %v669, %v738
      %v771 = vadd.f32 %v670, %v739
      %v772 = vadd.f32 %v671, %v740
      %v773 = vadd.f32 %v672, %v741
      %v774 = vadd.f32 %v673, %v742
      %v775 = vadd.f32 %v674, %v743
      %v776 = vadd.f32 %v675, %v744
      %v777 = vadd.f32 %v676, %v745
      %v778 = vadd.f32 %v677, %v746
      %v779 = vadd.f32 %v678, %v747
      %v780 = vadd.f32 %v679, %v748
      %v781 = vadd.f32 %v680, %v749
      %v782 = vadd.f32 %v681, %v750
      %v783 = vadd.f32 %v682, %v751
      %v784 = vadd.f32 %v683, %v752
      %v785 = vadd.f32 %v684, %v753
      %v786 = vadd.f32 %v685, %v754
      %v787 = vadd.f32 %v686, %v755
      %v788 = vadd.f32 %v687, %v756
      %v789 = vadd.f32 %v688, %v757
      %v790 = vadd.f32 %v689, %v758
      %v791 = vadd.f32 %v690, %v759
      %v792 = vadd.f32 %v691, %v760
      %v793 = vadd.f32 %v692, %v761
      %v794 = vadd.f32 %v693, %v762
      %v795 = vadd.f32 %v694, %v763
      %v796 = vadd.f32 %v695, %v764
      %v797 = vadd.f32 %v696, %v765
      %v798 = vadd.f32 %v697, %v766
      %v799 = vadd.f32 %v698, %v767
      %v800 = vld [vmem:[%s597 + $0x2] sm:$0xff]
      %v801 = vld [vmem:[%s597 + $0xa] sm:$0xff]
      %v802 = vld [vmem:[%s597 + $0x1a] sm:$0xff]
      %v803 = vld [vmem:[%s597 + $0x22] sm:$0xff]
      %v804 = vld [vmem:[%s597 + $0x32] sm:$0xff]
      %v805 = vld [vmem:[%s597 + $0x3a] sm:$0xff]
      %v806 = vld [vmem:[%s597 + $0x4a] sm:$0xff]
      %v807 = vld [vmem:[%s597 + $0x52] sm:$0xff]
      %v808 = vld [vmem:[%s597 + $0x62] sm:$0xff]
      %v809 = vld [vmem:[%s597 + $0x6a] sm:$0xff]
      %v810 = vld [vmem:[%s597 + $0x7a] sm:$0xff]
      %v811 = vld [vmem:[%s597 + $0x82] sm:$0xff]
      %v812 = vld [vmem:[%s597 + $0x92] sm:$0xff]
      %v813 = vld [vmem:[%s597 + $0x9a] sm:$0xff]
      %v814 = vld [vmem:[%s597 + $0xaa] sm:$0xff]
      %v815 = vld [vmem:[%s597 + $0xb2] sm:$0xff]
      %v816 = vld [vmem:[%s597 + $0xc2] sm:$0xff]
      %v817 = vld [vmem:[%s597 + $0xca] sm:$0xff]
      %v818 = vld [vmem:[%s597 + $0xda] sm:$0xff]
      %v819 = vld [vmem:[%s597 + $0xe2] sm:$0xff]
      %v820 = vld [vmem:[%s597 + $0xf2] sm:$0xff]
      %v821 = vld [vmem:[%s597 + $0xfa] sm:$0xff]
      %v822 = vld [vmem:[%s597 + $0x10a] sm:$0xff]
      %v823 = vld [vmem:[%s597 + $0x112] sm:$0xff]
      %v824 = vld [vmem:[%s597 + $0x122] sm:$0xff]
      %v825 = vld [vmem:[%s597 + $0x12a] sm:$0xff]
      %v826 = vld [vmem:[%s597 + $0x13a] sm:$0xff]
      %v827 = vld [vmem:[%s597 + $0x142] sm:$0xff]
      %v828 = vld [vmem:[%s597 + $0x152] sm:$0xff]
      %v829 = vld [vmem:[%s597 + $0x15a] sm:$0xff]
      %v830 = vld [vmem:[%s597 + $0x16a] sm:$0xff]
      %v831 = vld [vmem:[%s597 + $0x172] sm:$0xff]
      %v832 = vld [vmem:[%s2 + $0x5] sm:$0x1]
      %v833 = vlaneseq
      %v834 = vshrl.u32 %v833, 7
      %v835 = vsub.s32 0, %v834
      %v836 = vrot.slane %v832, %v835
      %v837 = vmul.f32 %v800, %v836
      %v838 = vmul.f32 %v801, %v836
      %v839 = vmul.f32 %v802, %v836
      %v840 = vmul.f32 %v803, %v836
      %v841 = vmul.f32 %v804, %v836
      %v842 = vmul.f32 %v805, %v836
      %v843 = vmul.f32 %v806, %v836
      %v844 = vmul.f32 %v807, %v836
      %v845 = vmul.f32 %v808, %v836
      %v846 = vmul.f32 %v809, %v836
      %v847 = vmul.f32 %v810, %v836
      %v848 = vmul.f32 %v811, %v836
      %v849 = vmul.f32 %v812, %v836
      %v850 = vmul.f32 %v813, %v836
      %v851 = vmul.f32 %v814, %v836
      %v852 = vmul.f32 %v815, %v836
      %v853 = vmul.f32 %v816, %v836
      %v854 = vmul.f32 %v817, %v836
      %v855 = vmul.f32 %v818, %v836
      %v856 = vmul.f32 %v819, %v836
      %v857 = vmul.f32 %v820, %v836
      %v858 = vmul.f32 %v821, %v836
      %v859 = vmul.f32 %v822, %v836
      %v860 = vmul.f32 %v823, %v836
      %v861 = vmul.f32 %v824, %v836
      %v862 = vmul.f32 %v825, %v836
      %v863 = vmul.f32 %v826, %v836
      %v864 = vmul.f32 %v827, %v836
      %v865 = vmul.f32 %v828, %v836
      %v866 = vmul.f32 %v829, %v836
      %v867 = vmul.f32 %v830, %v836
      %v868 = vmul.f32 %v831, %v836
      %v869 = vadd.f32 %v768, %v837
      %v870 = vadd.f32 %v769, %v838
      %v871 = vadd.f32 %v770, %v839
      %v872 = vadd.f32 %v771, %v840
      %v873 = vadd.f32 %v772, %v841
      %v874 = vadd.f32 %v773, %v842
      %v875 = vadd.f32 %v774, %v843
      %v876 = vadd.f32 %v775, %v844
      %v877 = vadd.f32 %v776, %v845
      %v878 = vadd.f32 %v777, %v846
      %v879 = vadd.f32 %v778, %v847
      %v880 = vadd.f32 %v779, %v848
      %v881 = vadd.f32 %v780, %v849
      %v882 = vadd.f32 %v781, %v850
      %v883 = vadd.f32 %v782, %v851
      %v884 = vadd.f32 %v783, %v852
      %v885 = vadd.f32 %v784, %v853
      %v886 = vadd.f32 %v785, %v854
      %v887 = vadd.f32 %v786, %v855
      %v888 = vadd.f32 %v787, %v856
      %v889 = vadd.f32 %v788, %v857
      %v890 = vadd.f32 %v789, %v858
      %v891 = vadd.f32 %v790, %v859
      %v892 = vadd.f32 %v791, %v860
      %v893 = vadd.f32 %v792, %v861
      %v894 = vadd.f32 %v793, %v862
      %v895 = vadd.f32 %v794, %v863
      %v896 = vadd.f32 %v795, %v864
      %v897 = vadd.f32 %v796, %v865
      %v898 = vadd.f32 %v797, %v866
      %v899 = vadd.f32 %v798, %v867
      %v900 = vadd.f32 %v799, %v868
      %s901 = scalar_lea.vmem %s315, 48
      %v902 = vld [vmem:[%s901] sm:$0xff]
      %v903 = vld [vmem:[%s901 + $0x8] sm:$0xff]
      %v904 = vld [vmem:[%s901 + $0x18] sm:$0xff]
      %v905 = vld [vmem:[%s901 + $0x20] sm:$0xff]
      %v906 = vld [vmem:[%s901 + $0x30] sm:$0xff]
      %v907 = vld [vmem:[%s901 + $0x38] sm:$0xff]
      %v908 = vld [vmem:[%s901 + $0x48] sm:$0xff]
      %v909 = vld [vmem:[%s901 + $0x50] sm:$0xff]
      %v910 = vld [vmem:[%s901 + $0x60] sm:$0xff]
      %v911 = vld [vmem:[%s901 + $0x68] sm:$0xff]
      %v912 = vld [vmem:[%s901 + $0x78] sm:$0xff]
      %v913 = vld [vmem:[%s901 + $0x80] sm:$0xff]
      %v914 = vld [vmem:[%s901 + $0x90] sm:$0xff]
      %v915 = vld [vmem:[%s901 + $0x98] sm:$0xff]
      %v916 = vld [vmem:[%s901 + $0xa8] sm:$0xff]
      %v917 = vld [vmem:[%s901 + $0xb0] sm:$0xff]
      %v918 = vld [vmem:[%s901 + $0xc0] sm:$0xff]
      %v919 = vld [vmem:[%s901 + $0xc8] sm:$0xff]
      %v920 = vld [vmem:[%s901 + $0xd8] sm:$0xff]
      %v921 = vld [vmem:[%s901 + $0xe0] sm:$0xff]
      %v922 = vld [vmem:[%s901 + $0xf0] sm:$0xff]
      %v923 = vld [vmem:[%s901 + $0xf8] sm:$0xff]
      %v924 = vld [vmem:[%s901 + $0x108] sm:$0xff]
      %v925 = vld [vmem:[%s901 + $0x110] sm:$0xff]
      %v926 = vld [vmem:[%s901 + $0x120] sm:$0xff]
      %v927 = vld [vmem:[%s901 + $0x128] sm:$0xff]
      %v928 = vld [vmem:[%s901 + $0x138] sm:$0xff]
      %v929 = vld [vmem:[%s901 + $0x140] sm:$0xff]
      %v930 = vld [vmem:[%s901 + $0x150] sm:$0xff]
      %v931 = vld [vmem:[%s901 + $0x158] sm:$0xff]
      %v932 = vld [vmem:[%s901 + $0x168] sm:$0xff]
      %v933 = vld [vmem:[%s901 + $0x170] sm:$0xff]
      %v934 = vld [vmem:[%s2 + $0x6] sm:$0x1]
      %v935 = vlaneseq
      %v936 = vshrl.u32 %v935, 7
      %v937 = vsub.s32 0, %v936
      %v938 = vrot.slane %v934, %v937
      %v939 = vmul.f32 %v902, %v938
      %v940 = vmul.f32 %v903, %v938
      %v941 = vmul.f32 %v904, %v938
      %v942 = vmul.f32 %v905, %v938
      %v943 = vmul.f32 %v906, %v938
      %v944 = vmul.f32 %v907, %v938
      %v945 = vmul.f32 %v908, %v938
      %v946 = vmul.f32 %v909, %v938
      %v947 = vmul.f32 %v910, %v938
      %v948 = vmul.f32 %v911, %v938
      %v949 = vmul.f32 %v912, %v938
      %v950 = vmul.f32 %v913, %v938
      %v951 = vmul.f32 %v914, %v938
      %v952 = vmul.f32 %v915, %v938
      %v953 = vmul.f32 %v916, %v938
      %v954 = vmul.f32 %v917, %v938
      %v955 = vmul.f32 %v918, %v938
      %v956 = vmul.f32 %v919, %v938
      %v957 = vmul.f32 %v920, %v938
      %v958 = vmul.f32 %v921, %v938
      %v959 = vmul.f32 %v922, %v938
      %v960 = vmul.f32 %v923, %v938
      %v961 = vmul.f32 %v924, %v938
      %v962 = vmul.f32 %v925, %v938
      %v963 = vmul.f32 %v926, %v938
      %v964 = vmul.f32 %v927, %v938
      %v965 = vmul.f32 %v928, %v938
      %v966 = vmul.f32 %v929, %v938
      %v967 = vmul.f32 %v930, %v938
      %v968 = vmul.f32 %v931, %v938
      %v969 = vmul.f32 %v932, %v938
      %v970 = vmul.f32 %v933, %v938
      %v971 = vadd.f32 %v869, %v939
      %v972 = vadd.f32 %v870, %v940
      %v973 = vadd.f32 %v871, %v941
      %v974 = vadd.f32 %v872, %v942
      %v975 = vadd.f32 %v873, %v943
      %v976 = vadd.f32 %v874, %v944
      %v977 = vadd.f32 %v875, %v945
      %v978 = vadd.f32 %v876, %v946
      %v979 = vadd.f32 %v877, %v947
      %v980 = vadd.f32 %v878, %v948
      %v981 = vadd.f32 %v879, %v949
      %v982 = vadd.f32 %v880, %v950
      %v983 = vadd.f32 %v881, %v951
      %v984 = vadd.f32 %v882, %v952
      %v985 = vadd.f32 %v883, %v953
      %v986 = vadd.f32 %v884, %v954
      %v987 = vadd.f32 %v885, %v955
      %v988 = vadd.f32 %v886, %v956
      %v989 = vadd.f32 %v887, %v957
      %v990 = vadd.f32 %v888, %v958
      %v991 = vadd.f32 %v889, %v959
      %v992 = vadd.f32 %v890, %v960
      %v993 = vadd.f32 %v891, %v961
      %v994 = vadd.f32 %v892, %v962
      %v995 = vadd.f32 %v893, %v963
      %v996 = vadd.f32 %v894, %v964
      %v997 = vadd.f32 %v895, %v965
      %v998 = vadd.f32 %v896, %v966
      %v999 = vadd.f32 %v897, %v967
      %v1000 = vadd.f32 %v898, %v968
      %v1001 = vadd.f32 %v899, %v969
      %v1002 = vadd.f32 %v900, %v970
      %v1003 = vld [vmem:[%s901 + $0x1] sm:$0xff]
      %v1004 = vld [vmem:[%s901 + $0x9] sm:$0xff]
      %v1005 = vld [vmem:[%s901 + $0x19] sm:$0xff]
      %v1006 = vld [vmem:[%s901 + $0x21] sm:$0xff]
      %v1007 = vld [vmem:[%s901 + $0x31] sm:$0xff]
      %v1008 = vld [vmem:[%s901 + $0x39] sm:$0xff]
      %v1009 = vld [vmem:[%s901 + $0x49] sm:$0xff]
      %v1010 = vld [vmem:[%s901 + $0x51] sm:$0xff]
      %v1011 = vld [vmem:[%s901 + $0x61] sm:$0xff]
      %v1012 = vld [vmem:[%s901 + $0x69] sm:$0xff]
      %v1013 = vld [vmem:[%s901 + $0x79] sm:$0xff]
      %v1014 = vld [vmem:[%s901 + $0x81] sm:$0xff]
      %v1015 = vld [vmem:[%s901 + $0x91] sm:$0xff]
      %v1016 = vld [vmem:[%s901 + $0x99] sm:$0xff]
      %v1017 = vld [vmem:[%s901 + $0xa9] sm:$0xff]
      %v1018 = vld [vmem:[%s901 + $0xb1] sm:$0xff]
      %v1019 = vld [vmem:[%s901 + $0xc1] sm:$0xff]
      %v1020 = vld [vmem:[%s901 + $0xc9] sm:$0xff]
      %v1021 = vld [vmem:[%s901 + $0xd9] sm:$0xff]
      %v1022 = vld [vmem:[%s901 + $0xe1] sm:$0xff]
      %v1023 = vld [vmem:[%s901 + $0xf1] sm:$0xff]
      %v1024 = vld [vmem:[%s901 + $0xf9] sm:$0xff]
      %v1025 = vld [vmem:[%s901 + $0x109] sm:$0xff]
      %v1026 = vld [vmem:[%s901 + $0x111] sm:$0xff]
      %v1027 = vld [vmem:[%s901 + $0x121] sm:$0xff]
      %v1028 = vld [vmem:[%s901 + $0x129] sm:$0xff]
      %v1029 = vld [vmem:[%s901 + $0x139] sm:$0xff]
      %v1030 = vld [vmem:[%s901 + $0x141] sm:$0xff]
      %v1031 = vld [vmem:[%s901 + $0x151] sm:$0xff]
      %v1032 = vld [vmem:[%s901 + $0x159] sm:$0xff]
      %v1033 = vld [vmem:[%s901 + $0x169] sm:$0xff]
      %v1034 = vld [vmem:[%s901 + $0x171] sm:$0xff]
      %v1035 = vld [vmem:[%s2 + $0x7] sm:$0x1]
      %v1036 = vlaneseq
      %v1037 = vshrl.u32 %v1036, 7
      %v1038 = vsub.s32 0, %v1037
      %v1039 = vrot.slane %v1035, %v1038
      %v1040 = vmul.f32 %v1003, %v1039
      %v1041 = vmul.f32 %v1004, %v1039
      %v1042 = vmul.f32 %v1005, %v1039
      %v1043 = vmul.f32 %v1006, %v1039
      %v1044 = vmul.f32 %v1007, %v1039
      %v1045 = vmul.f32 %v1008, %v1039
      %v1046 = vmul.f32 %v1009, %v1039
      %v1047 = vmul.f32 %v1010, %v1039
      %v1048 = vmul.f32 %v1011, %v1039
      %v1049 = vmul.f32 %v1012, %v1039
      %v1050 = vmul.f32 %v1013, %v1039
      %v1051 = vmul.f32 %v1014, %v1039
      %v1052 = vmul.f32 %v1015, %v1039
      %v1053 = vmul.f32 %v1016, %v1039
      %v1054 = vmul.f32 %v1017, %v1039
      %v1055 = vmul.f32 %v1018, %v1039
      %v1056 = vmul.f32 %v1019, %v1039
      %v1057 = vmul.f32 %v1020, %v1039
      %v1058 = vmul.f32 %v1021, %v1039
      %v1059 = vmul.f32 %v1022, %v1039
      %v1060 = vmul.f32 %v1023, %v1039
      %v1061 = vmul.f32 %v1024, %v1039
      %v1062 = vmul.f32 %v1025, %v1039
      %v1063 = vmul.f32 %v1026, %v1039
      %v1064 = vmul.f32 %v1027, %v1039
      %v1065 = vmul.f32 %v1028, %v1039
      %v1066 = vmul.f32 %v1029, %v1039
      %v1067 = vmul.f32 %v1030, %v1039
      %v1068 = vmul.f32 %v1031, %v1039
      %v1069 = vmul.f32 %v1032, %v1039
      %v1070 = vmul.f32 %v1033, %v1039
      %v1071 = vmul.f32 %v1034, %v1039
      %v1072 = vadd.f32 %v971, %v1040
      %v1073 = vadd.f32 %v972, %v1041
      %v1074 = vadd.f32 %v973, %v1042
      %v1075 = vadd.f32 %v974, %v1043
      %v1076 = vadd.f32 %v975, %v1044
      %v1077 = vadd.f32 %v976, %v1045
      %v1078 = vadd.f32 %v977, %v1046
      %v1079 = vadd.f32 %v978, %v1047
      %v1080 = vadd.f32 %v979, %v1048
      %v1081 = vadd.f32 %v980, %v1049
      %v1082 = vadd.f32 %v981, %v1050
      %v1083 = vadd.f32 %v982, %v1051
      %v1084 = vadd.f32 %v983, %v1052
      %v1085 = vadd.f32 %v984, %v1053
      %v1086 = vadd.f32 %v985, %v1054
      %v1087 = vadd.f32 %v986, %v1055
      %v1088 = vadd.f32 %v987, %v1056
      %v1089 = vadd.f32 %v988, %v1057
      %v1090 = vadd.f32 %v989, %v1058
      %v1091 = vadd.f32 %v990, %v1059
      %v1092 = vadd.f32 %v991, %v1060
      %v1093 = vadd.f32 %v992, %v1061
      %v1094 = vadd.f32 %v993, %v1062
      %v1095 = vadd.f32 %v994, %v1063
      %v1096 = vadd.f32 %v995, %v1064
      %v1097 = vadd.f32 %v996, %v1065
      %v1098 = vadd.f32 %v997, %v1066
      %v1099 = vadd.f32 %v998, %v1067
      %v1100 = vadd.f32 %v999, %v1068
      %v1101 = vadd.f32 %v1000, %v1069
      %v1102 = vadd.f32 %v1001, %v1070
      %v1103 = vadd.f32 %v1002, %v1071
      %v1104 = vld [vmem:[%s901 + $0x2] sm:$0xff]
      %v1105 = vld [vmem:[%s901 + $0xa] sm:$0xff]
      %v1106 = vld [vmem:[%s901 + $0x1a] sm:$0xff]
      %v1107 = vld [vmem:[%s901 + $0x22] sm:$0xff]
      %v1108 = vld [vmem:[%s901 + $0x32] sm:$0xff]
      %v1109 = vld [vmem:[%s901 + $0x3a] sm:$0xff]
      %v1110 = vld [vmem:[%s901 + $0x4a] sm:$0xff]
      %v1111 = vld [vmem:[%s901 + $0x52] sm:$0xff]
      %v1112 = vld [vmem:[%s901 + $0x62] sm:$0xff]
      %v1113 = vld [vmem:[%s901 + $0x6a] sm:$0xff]
      %v1114 = vld [vmem:[%s901 + $0x7a] sm:$0xff]
      %v1115 = vld [vmem:[%s901 + $0x82] sm:$0xff]
      %v1116 = vld [vmem:[%s901 + $0x92] sm:$0xff]
      %v1117 = vld [vmem:[%s901 + $0x9a] sm:$0xff]
      %v1118 = vld [vmem:[%s901 + $0xaa] sm:$0xff]
      %v1119 = vld [vmem:[%s901 + $0xb2] sm:$0xff]
      %v1120 = vld [vmem:[%s901 + $0xc2] sm:$0xff]
      %v1121 = vld [vmem:[%s901 + $0xca] sm:$0xff]
      %v1122 = vld [vmem:[%s901 + $0xda] sm:$0xff]
      %v1123 = vld [vmem:[%s901 + $0xe2] sm:$0xff]
      %v1124 = vld [vmem:[%s901 + $0xf2] sm:$0xff]
      %v1125 = vld [vmem:[%s901 + $0xfa] sm:$0xff]
      %v1126 = vld [vmem:[%s901 + $0x10a] sm:$0xff]
      %v1127 = vld [vmem:[%s901 + $0x112] sm:$0xff]
      %v1128 = vld [vmem:[%s901 + $0x122] sm:$0xff]
      %v1129 = vld [vmem:[%s901 + $0x12a] sm:$0xff]
      %v1130 = vld [vmem:[%s901 + $0x13a] sm:$0xff]
      %v1131 = vld [vmem:[%s901 + $0x142] sm:$0xff]
      %v1132 = vld [vmem:[%s901 + $0x152] sm:$0xff]
      %v1133 = vld [vmem:[%s901 + $0x15a] sm:$0xff]
      %v1134 = vld [vmem:[%s901 + $0x16a] sm:$0xff]
      %v1135 = vld [vmem:[%s901 + $0x172] sm:$0xff]
      %v1136 = vld [vmem:[%s2 + $0x8] sm:$0x1]
      %v1137 = vlaneseq
      %v1138 = vshrl.u32 %v1137, 7
      %v1139 = vsub.s32 0, %v1138
      %v1140 = vrot.slane %v1136, %v1139
      %v1141 = vmul.f32 %v1104, %v1140
      %v1142 = vmul.f32 %v1105, %v1140
      %v1143 = vmul.f32 %v1106, %v1140
      %v1144 = vmul.f32 %v1107, %v1140
      %v1145 = vmul.f32 %v1108, %v1140
      %v1146 = vmul.f32 %v1109, %v1140
      %v1147 = vmul.f32 %v1110, %v1140
      %v1148 = vmul.f32 %v1111, %v1140
      %v1149 = vmul.f32 %v1112, %v1140
      %v1150 = vmul.f32 %v1113, %v1140
      %v1151 = vmul.f32 %v1114, %v1140
      %v1152 = vmul.f32 %v1115, %v1140
      %v1153 = vmul.f32 %v1116, %v1140
      %v1154 = vmul.f32 %v1117, %v1140
      %v1155 = vmul.f32 %v1118, %v1140
      %v1156 = vmul.f32 %v1119, %v1140
      %v1157 = vmul.f32 %v1120, %v1140
      %v1158 = vmul.f32 %v1121, %v1140
      %v1159 = vmul.f32 %v1122, %v1140
      %v1160 = vmul.f32 %v1123, %v1140
      %v1161 = vmul.f32 %v1124, %v1140
      %v1162 = vmul.f32 %v1125, %v1140
      %v1163 = vmul.f32 %v1126, %v1140
      %v1164 = vmul.f32 %v1127, %v1140
      %v1165 = vmul.f32 %v1128, %v1140
      %v1166 = vmul.f32 %v1129, %v1140
      %v1167 = vmul.f32 %v1130, %v1140
      %v1168 = vmul.f32 %v1131, %v1140
      %v1169 = vmul.f32 %v1132, %v1140
      %v1170 = vmul.f32 %v1133, %v1140
      %v1171 = vmul.f32 %v1134, %v1140
      %v1172 = vmul.f32 %v1135, %v1140
      %v1173 = vadd.f32 %v1072, %v1141
      %v1174 = vadd.f32 %v1073, %v1142
      %v1175 = vadd.f32 %v1074, %v1143
      %v1176 = vadd.f32 %v1075, %v1144
      %v1177 = vadd.f32 %v1076, %v1145
      %v1178 = vadd.f32 %v1077, %v1146
      %v1179 = vadd.f32 %v1078, %v1147
      %v1180 = vadd.f32 %v1079, %v1148
      %v1181 = vadd.f32 %v1080, %v1149
      %v1182 = vadd.f32 %v1081, %v1150
      %v1183 = vadd.f32 %v1082, %v1151
      %v1184 = vadd.f32 %v1083, %v1152
      %v1185 = vadd.f32 %v1084, %v1153
      %v1186 = vadd.f32 %v1085, %v1154
      %v1187 = vadd.f32 %v1086, %v1155
      %v1188 = vadd.f32 %v1087, %v1156
      %v1189 = vadd.f32 %v1088, %v1157
      %v1190 = vadd.f32 %v1089, %v1158
      %v1191 = vadd.f32 %v1090, %v1159
      %v1192 = vadd.f32 %v1091, %v1160
      %v1193 = vadd.f32 %v1092, %v1161
      %v1194 = vadd.f32 %v1093, %v1162
      %v1195 = vadd.f32 %v1094, %v1163
      %v1196 = vadd.f32 %v1095, %v1164
      %v1197 = vadd.f32 %v1096, %v1165
      %v1198 = vadd.f32 %v1097, %v1166
      %v1199 = vadd.f32 %v1098, %v1167
      %v1200 = vadd.f32 %v1099, %v1168
      %v1201 = vadd.f32 %v1100, %v1169
      %v1202 = vadd.f32 %v1101, %v1170
      %v1203 = vadd.f32 %v1102, %v1171
      %v1204 = vadd.f32 %v1103, %v1172
      %v1205 = vld [vmem:[%s3] sm:$0x1]
      %v1207 = vlaneseq
      %v1208 = vshrl.u32 %v1207, 7
      %v1209 = vsub.s32 0, %v1208
      %v1210 = vrot.slane %v1205, %v1209
      %v1212 = vmul.f32 %v1173, %v1210
      %v1213 = vmul.f32 %v1174, %v1210
      %v1214 = vmul.f32 %v1175, %v1210
      %v1215 = vmul.f32 %v1176, %v1210
      %v1216 = vmul.f32 %v1177, %v1210
      %v1217 = vmul.f32 %v1178, %v1210
      %v1218 = vmul.f32 %v1179, %v1210
      %v1219 = vmul.f32 %v1180, %v1210
      %v1220 = vmul.f32 %v1181, %v1210
      %v1221 = vmul.f32 %v1182, %v1210
      %v1222 = vmul.f32 %v1183, %v1210
      %v1223 = vmul.f32 %v1184, %v1210
      %v1224 = vmul.f32 %v1185, %v1210
      %v1225 = vmul.f32 %v1186, %v1210
      %v1226 = vmul.f32 %v1187, %v1210
      %v1227 = vmul.f32 %v1188, %v1210
      %v1228 = vmul.f32 %v1189, %v1210
      %v1229 = vmul.f32 %v1190, %v1210
      %v1230 = vmul.f32 %v1191, %v1210
      %v1231 = vmul.f32 %v1192, %v1210
      %v1232 = vmul.f32 %v1193, %v1210
      %v1233 = vmul.f32 %v1194, %v1210
      %v1234 = vmul.f32 %v1195, %v1210
      %v1235 = vmul.f32 %v1196, %v1210
      %v1236 = vmul.f32 %v1197, %v1210
      %v1237 = vmul.f32 %v1198, %v1210
      %v1238 = vmul.f32 %v1199, %v1210
      %v1239 = vmul.f32 %v1200, %v1210
      %v1240 = vmul.f32 %v1201, %v1210
      %v1241 = vmul.f32 %v1202, %v1210
      %v1242 = vmul.f32 %v1203, %v1210
      %v1243 = vmul.f32 %v1204, %v1210
      %v1244 = vld [vmem:[%s4] sm:$0x1]
      %v1246 = vlaneseq
      %v1247 = vshrl.u32 %v1246, 7
      %v1248 = vsub.s32 0, %v1247
      %v1249 = vrot.slane %v1244, %v1248
      %v1251 = vadd.f32 %v1212, %v1249
      %v1252 = vadd.f32 %v1213, %v1249
      %v1253 = vadd.f32 %v1214, %v1249
      %v1254 = vadd.f32 %v1215, %v1249
      %v1255 = vadd.f32 %v1216, %v1249
      %v1256 = vadd.f32 %v1217, %v1249
      %v1257 = vadd.f32 %v1218, %v1249
      %v1258 = vadd.f32 %v1219, %v1249
      %v1259 = vadd.f32 %v1220, %v1249
      %v1260 = vadd.f32 %v1221, %v1249
      %v1261 = vadd.f32 %v1222, %v1249
      %v1262 = vadd.f32 %v1223, %v1249
      %v1263 = vadd.f32 %v1224, %v1249
      %v1264 = vadd.f32 %v1225, %v1249
      %v1265 = vadd.f32 %v1226, %v1249
      %v1266 = vadd.f32 %v1227, %v1249
      %v1267 = vadd.f32 %v1228, %v1249
      %v1268 = vadd.f32 %v1229, %v1249
      %v1269 = vadd.f32 %v1230, %v1249
      %v1270 = vadd.f32 %v1231, %v1249
      %v1271 = vadd.f32 %v1232, %v1249
      %v1272 = vadd.f32 %v1233, %v1249
      %v1273 = vadd.f32 %v1234, %v1249
      %v1274 = vadd.f32 %v1235, %v1249
      %v1275 = vadd.f32 %v1236, %v1249
      %v1276 = vadd.f32 %v1237, %v1249
      %v1277 = vadd.f32 %v1238, %v1249
      %v1278 = vadd.f32 %v1239, %v1249
      %v1279 = vadd.f32 %v1240, %v1249
      %v1280 = vadd.f32 %v1241, %v1249
      %v1281 = vadd.f32 %v1242, %v1249
      %v1282 = vadd.f32 %v1243, %v1249
      %v1283 = vmax.f32 %v1251, 0.0
      %v1284 = vmax.f32 %v1252, 0.0
      %v1285 = vmax.f32 %v1253, 0.0
      %v1286 = vmax.f32 %v1254, 0.0
      %v1287 = vmax.f32 %v1255, 0.0
      %v1288 = vmax.f32 %v1256, 0.0
      %v1289 = vmax.f32 %v1257, 0.0
      %v1290 = vmax.f32 %v1258, 0.0
      %v1291 = vmax.f32 %v1259, 0.0
      %v1292 = vmax.f32 %v1260, 0.0
      %v1293 = vmax.f32 %v1261, 0.0
      %v1294 = vmax.f32 %v1262, 0.0
      %v1295 = vmax.f32 %v1263, 0.0
      %v1296 = vmax.f32 %v1264, 0.0
      %v1297 = vmax.f32 %v1265, 0.0
      %v1298 = vmax.f32 %v1266, 0.0
      %v1299 = vmax.f32 %v1267, 0.0
      %v1300 = vmax.f32 %v1268, 0.0
      %v1301 = vmax.f32 %v1269, 0.0
      %v1302 = vmax.f32 %v1270, 0.0
      %v1303 = vmax.f32 %v1271, 0.0
      %v1304 = vmax.f32 %v1272, 0.0
      %v1305 = vmax.f32 %v1273, 0.0
      %v1306 = vmax.f32 %v1274, 0.0
      %v1307 = vmax.f32 %v1275, 0.0
      %v1308 = vmax.f32 %v1276, 0.0
      %v1309 = vmax.f32 %v1277, 0.0
      %v1310 = vmax.f32 %v1278, 0.0
      %v1311 = vmax.f32 %v1279, 0.0
      %v1312 = vmax.f32 %v1280, 0.0
      %v1313 = vmax.f32 %v1281, 0.0
      %v1314 = vmax.f32 %v1282, 0.0
      %v1315 = vld [vmem:[%s5] sm:$0xf]
      %vm1316 = vcmask 195584
      %v1318 = vsel %vm1316, %v1315, 0
      %v1321 = vsel %vm1316, %v1283, 0
      %v1324 = vsel %vm1316, %v1284, 0
      %v1327 = vsel %vm1316, %v1285, 0
      %v1330 = vsel %vm1316, %v1286, 0
      %v1333 = vsel %vm1316, %v1287, 0
      %v1336 = vsel %vm1316, %v1288, 0
      %v1339 = vsel %vm1316, %v1289, 0
      %v1342 = vsel %vm1316, %v1290, 0
      %v1345 = vsel %vm1316, %v1291, 0
      %v1348 = vsel %vm1316, %v1292, 0
      %v1351 = vsel %vm1316, %v1293, 0
      %v1354 = vsel %vm1316, %v1294, 0
      %v1357 = vsel %vm1316, %v1295, 0
      %v1360 = vsel %vm1316, %v1296, 0
      %v1363 = vsel %vm1316, %v1297, 0
      %v1366 = vsel %vm1316, %v1298, 0
      %v1369 = vsel %vm1316, %v1299, 0
      %v1372 = vsel %vm1316, %v1300, 0
      %v1375 = vsel %vm1316, %v1301, 0
      %v1378 = vsel %vm1316, %v1302, 0
      %v1381 = vsel %vm1316, %v1303, 0
      %v1384 = vsel %vm1316, %v1304, 0
      %v1387 = vsel %vm1316, %v1305, 0
      %v1390 = vsel %vm1316, %v1306, 0
      %v1393 = vsel %vm1316, %v1307, 0
      %v1396 = vsel %vm1316, %v1308, 0
      %v1399 = vsel %vm1316, %v1309, 0
      %v1402 = vsel %vm1316, %v1310, 0
      %v1405 = vsel %vm1316, %v1311, 0
      %v1408 = vsel %vm1316, %v1312, 0
      %v1411 = vsel %vm1316, %v1313, 0
      %v1414 = vsel %vm1316, %v1314, 0
      %1416 = vmatprep.subr.mxu0 0.0
      %1417 = vmatpush1.xpose.msra.mxu0 %v1321
      %1418 = vmatprep.subr.mxu0 0.0
      %1419 = vmatpush1.xpose.msra.mxu0 %v1324
      %1420 = vmatprep.subr.mxu0 0.0
      %1421 = vmatpush1.xpose.msra.mxu0 %v1327
      %1422 = vmatprep.subr.mxu0 0.0
      %1423 = vmatpush1.xpose.msra.mxu0 %v1330
      %1424 = vmatprep.subr.mxu0 0.0
      %1425 = vmatpush1.xpose.msra.mxu0 %v1333
      %1426 = vmatprep.subr.mxu0 0.0
      %1427 = vmatpush1.xpose.msra.mxu0 %v1336
      %1428 = vmatprep.subr.mxu0 0.0
      %1429 = vmatpush1.xpose.msra.mxu0 %v1339
      %1430 = vmatprep.subr.mxu0 0.0
      %1431 = vmatpush1.xpose.msra.mxu0 %v1342
      %1432 = vmatprep.subr.mxu0 0.0
      %1433 = vmatpush1.xpose.msra.mxu0 %v1345
      %1434 = vmatprep.subr.mxu0 0.0
      %1435 = vmatpush1.xpose.msra.mxu0 %v1348
      %1436 = vmatprep.subr.mxu0 0.0
      %1437 = vmatpush1.xpose.msra.mxu0 %v1351
      %1438 = vmatprep.subr.mxu0 0.0
      %1439 = vmatpush1.xpose.msra.mxu0 %v1354
      %1440 = vmatprep.subr.mxu0 0.0
      %1441 = vmatpush1.xpose.msra.mxu0 %v1357
      %1442 = vmatprep.subr.mxu0 0.0
      %1443 = vmatpush1.xpose.msra.mxu0 %v1360
      %1444 = vmatprep.subr.mxu0 0.0
      %1445 = vmatpush1.xpose.msra.mxu0 %v1363
      %1446 = vmatprep.subr.mxu0 0.0
      %1447 = vmatpush1.xpose.msra.mxu0 %v1366
      %1448 = vmatprep.subr.mxu0 0.0
      %1449 = vmatpush1.xpose.msra.mxu0 %v1369
      %1450 = vmatprep.subr.mxu0 0.0
      %1451 = vmatpush1.xpose.msra.mxu0 %v1372
      %1452 = vmatprep.subr.mxu0 0.0
      %1453 = vmatpush1.xpose.msra.mxu0 %v1375
      %1454 = vmatprep.subr.mxu0 0.0
      %1455 = vmatpush1.xpose.msra.mxu0 %v1378
      %1456 = vmatprep.subr.mxu0 0.0
      %1457 = vmatpush1.xpose.msra.mxu0 %v1381
      %1458 = vmatprep.subr.mxu0 0.0
      %1459 = vmatpush1.xpose.msra.mxu0 %v1384
      %1460 = vmatprep.subr.mxu0 0.0
      %1461 = vmatpush1.xpose.msra.mxu0 %v1387
      %1462 = vmatprep.subr.mxu0 0.0
      %1463 = vmatpush1.xpose.msra.mxu0 %v1390
      %1464 = vmatprep.subr.mxu0 0.0
      %1465 = vmatpush1.xpose.msra.mxu0 %v1393
      %1466 = vmatprep.subr.mxu0 0.0
      %1467 = vmatpush1.xpose.msra.mxu0 %v1396
      %1468 = vmatprep.subr.mxu0 0.0
      %1469 = vmatpush1.xpose.msra.mxu0 %v1399
      %1470 = vmatprep.subr.mxu0 0.0
      %1471 = vmatpush1.xpose.msra.mxu0 %v1402
      %1472 = vmatprep.subr.mxu0 0.0
      %1473 = vmatpush1.xpose.msra.mxu0 %v1405
      %1474 = vmatprep.subr.mxu0 0.0
      %1475 = vmatpush1.xpose.msra.mxu0 %v1408
      %1476 = vmatprep.subr.mxu0 0.0
      %1477 = vmatpush1.xpose.msra.mxu0 %v1411
      %1478 = vmatprep.subr.mxu0 0.0
      %1479 = vmatpush1.xpose.msra.mxu0 %v1414
      %1480 = vmatprep.mubr.f32.mxu0 0.0
      %1481 = vmatmul.mubr.f32.gmra.mrb[0].mxu0 %v1318
      %v1482 = vpop.f32.mrb[0].mxu0
      %v1483 = vadd.f32 0.0, %v1482
      %v1484 = vpop.f32.mrb[0].mxu0
      %v1485 = vadd.f32 0.0, %v1484
      %1486 = vdwg.mxu0
      %v1487 = vld [vmem:[%s6] sm:$0xf]
      %1489 = vset.pattern.permute.xlu0 0
      %1490 = vperm.xlu0 %1489, %v1487
      %v1491 = vpop.permute.xlu0 %1490
      %v1493 = vmul.f32 %v1483, %v1491
      %v1494 = vmul.f32 %v1485, %v1491
      %v1495 = vld [vmem:[%s7] sm:$0xf]
      %1497 = vset.pattern.permute.xlu0 0
      %1498 = vperm.xlu0 %1497, %v1495
      %v1499 = vpop.permute.xlu0 %1498
      %v1501 = vadd.f32 %v1493, %v1499
      %v1502 = vadd.f32 %v1494, %v1499
      %v1503 = vld [vmem:[%s320] sm:$0xff]
      %v1505 = vcombine.high %v1503, %v1503
      %v1507 = vadd.f32 %v1501, %v1503
      %v1508 = vadd.f32 %v1502, %v1505
      %v1511 = vcombine.low %v1507, %v1508
      %1513 = vst [vmem:[%s325] sm:$0xff] %v1511
      %p1514 = scmp.lt.s32.totalorder %s19, 1
      %s1515 = scalar_select %p1514, %s19, 1
      %s1516 = smul.addr %s1515, 2
      %s1517 = smul.addr %s1516, 4
      %s1518 = scalar_lea.vmem %s8, %s1517
      // Predicated region
      $region53: #{a_call__.3} parent=51 // pred_check
        %p1519 = pneg %p215
      $region54: #{a_call__.3} parent=51 // pred_check_branch
        %1521 = sbr.rel (%p1519) target = $region56
      $region55: #{a_call__.3} parent=51 // pred_region
        _
      $region56: #{a_call__.3} parent=51 // pred_fallthru
        _
    $region52: #{a_call__.3} parent=5 // pred_fallthru
      _
    %p1522 = scmp.le.s32.totalorder 2, %s14
    // Predicated region
    $region57: #{a_call__.3} parent=5 // pred_check
      %p1523 = pneg %p1522
    $region58: #{a_call__.3} parent=5 // pred_check_branch
      %1525 = sbr.rel (%p1523) target = $region60
    $region59: #{a_call__.3} parent=5 // pred_region
      %s1526 = ssub.s32 %s14, 2
      // Predicated region
      $region61: #{a_call__.3} parent=59 // pred_check
        %p1527 = pneg %p221
      $region62: #{a_call__.3} parent=59 // pred_check_branch
        %1529 = sbr.rel (%p1527) target = $region64
      $region63: #{a_call__.3} parent=59 // pred_region
        %p1530 = scmp.lt.s32.totalorder %s20, 1
        %s1531 = scalar_select %p1530, %s20, 1
        %s1532 = smul.addr %s1531, 2
        %s1533 = smul.addr %s1532, 4
        %s1534 = scalar_lea.vmem %s8, %s1533
      $region64: #{a_call__.3} parent=59 // pred_fallthru
        _
    $region60: #{a_call__.3} parent=5 // pred_fallthru
      _
  $region6: #{a_call__.3} parent=0 // loop_footer
    %s18 = sadd.s32 1, %s14
  $region7: #{a_call__.3} parent=0 // loop_footer_branch
    %13 = sbr.rel target = $region3
  $region8: #{a_call__.3} parent=0 // loop_exit
    _

</llo_original>
